<compile_context>
chip_gen: v5e
topology: v5e:2x2
jax: 0.10.0
libtpu: 0.0.40
codegen_flags: <defaults>
</compile_context>

<pallas_src>
import functools

import jax
import jax.numpy as jnp
import jax.scipy.linalg as jsl
from jax.experimental import pallas as pl
from jax.experimental.pallas import tpu as pltpu

# ---------------- fixed, deterministic "hyperparameters" -------------------
LENGTHSCALE = 1.0      # GP RBF lengthscale
OUTPUTSCALE = 1.0      # GP RBF outputscale
NOISE = 0.1            # GP observation noise
LR = 1e-3              # Adam lr used in update_predictive_model
ADAM_EPS = 1e-8
N_REPEATS = 3          # small stand-in for n_repeats=100
BATCH_SIZE = 4         # stand-in for batch_size=10 (= MLP input feature dim)
HIDDEN = 8             # classifier hidden width

# Arrays here are tiny, so every kernel uses full-array blocks in VMEM.
_VMEM = pl.BlockSpec(memory_space=pltpu.MemorySpace.VMEM)


# ----------------------------- Pallas kernels ------------------------------
def _rbf_gram_kernel(x_ref, k_ref, *, lengthscale, outputscale, noise):
    """K[i,j] = outputscale*exp(-0.5*||x_i-x_j||^2/ls^2) + noise*[i==j]."""
    x = x_ref[...]                                                    # (n, d)
    d = x.shape[1]
    xx = x * x                                                        # hoisted, reused twice
    ones = jnp.ones((1, d), dtype=jnp.float32)
    sq_rows = jnp.sum(xx, axis=1, keepdims=True)                      # (n, 1)
    sq_cols = jax.lax.dot_general(ones, xx, (((1,), (1,)), ((), ())),
                                  preferred_element_type=jnp.float32)  # (1, n)
    cross = jax.lax.dot_general(x, x, (((1,), (1,)), ((), ())),
                                preferred_element_type=jnp.float32)    # (n, n)
    sq = jnp.maximum(sq_rows + sq_cols - 2.0 * cross, 0.0)
    k = outputscale * jnp.exp(-0.5 * sq / (lengthscale * lengthscale))
    # noise on the diagonal, folded into the same kernel (no jnp.eye pass).
    row = jax.lax.broadcasted_iota(jnp.int32, k.shape, 0)
    col = jax.lax.broadcasted_iota(jnp.int32, k.shape, 1)
    k_ref[...] = k + jnp.where(row == col, jnp.float32(noise), jnp.float32(0.0))


def rbf_gram_with_noise(x):
    """One Pallas call: full noisy Gram matrix over all context points."""
    n = x.shape[0]
    kern = functools.partial(_rbf_gram_kernel, lengthscale=LENGTHSCALE,
                             outputscale=OUTPUTSCALE, noise=NOISE)
    return pl.pallas_call(
        kern,
        out_shape=jax.ShapeDtypeStruct((n, n), jnp.float32),
        in_specs=[_VMEM],
        out_specs=_VMEM,
    )(x.astype(jnp.float32))


def _fused_repeats_kernel(x_ref, y_ref, xv_ref, yv_ref,
                          w1_ref, b1_ref, w2t_ref, b2_ref,
                          loss_ref, *, lr, eps, n_repeats):
    """All n_repeats in ONE kernel invocation (no grid):
       each repeat = update_predictive_model (fwd + MSE bwd + fresh 1-step Adam,
       exactly as the reference re-creates the optimizer each repeat while the
       classifier itself persists) followed by classifier.eval() on X_val and
       the validation MSE.  Params + loss accumulator are fori_loop carries
       (vregs); the (1,1) mean loss is written exactly once after the loop."""
    x = x_ref[...]                                                    # (N, D)
    y = y_ref[...]                                                    # (N, 1)
    xv = xv_ref[...]                                                  # (M, D)
    yv = yv_ref[...]                                                  # (M, 1)

    n_elems = float(x.shape[0])                                       # train pred is (N,1)
    m_elems = float(yv.shape[0] * yv.shape[1])                        # val pred is (M,1)

    def adam_first_step(p, g):
        # A fresh Adam optimizer (zero moments) taking exactly one bias-corrected
        # step reduces to  p <- p - lr * g / (|g| + eps).
        return p - lr * g / (jnp.abs(g) + eps)

    def one_repeat(_, carry):
        w1, b1, w2t, b2, acc = carry
        # ---- training forward  (w2 kept as (1,H) row vector -> VPU+reduce)
        z1 = jnp.dot(x, w1, preferred_element_type=jnp.float32) + b1      # (N, H)
        a1 = jnp.maximum(z1, 0.0)
        pred = jnp.sum(a1 * w2t, axis=-1, keepdims=True) + b2             # (N, 1)
        # ---- backward through MSE
        dpred = (2.0 / n_elems) * (pred - y)                              # (N, 1)
        dw2t = jnp.sum(dpred * a1, axis=0, keepdims=True)                 # (1, H)
        db2 = jnp.sum(dpred, axis=0, keepdims=True)                       # (1, 1)
        da1 = dpred * w2t                                                 # (N, H) broadcast
        dz1 = jnp.where(z1 > 0.0, da1, 0.0)
        dw1 = jax.lax.dot_general(x, dz1, (((0,), (0,)), ((), ())),
                                  preferred_element_type=jnp.float32)     # (D, H)
        db1 = jnp.sum(dz1, axis=0, keepdims=True)                         # (1, H)
        w1n = adam_first_step(w1, dw1)
        b1n = adam_first_step(b1, db1)
        w2tn = adam_first_step(w2t, dw2t)
        b2n = adam_first_step(b2, db2)
        # ---- validation forward + MSE (all in-register)
        z1v = jnp.dot(xv, w1n, preferred_element_type=jnp.float32) + b1n  # (M, H)
        a1v = jnp.maximum(z1v, 0.0)
        predv = jnp.sum(a1v * w2tn, axis=-1, keepdims=True) + b2n         # (M, 1)
        dv = predv - yv
        loss = jnp.sum(dv * dv, axis=0, keepdims=True) * (1.0 / m_elems)  # (1, 1)
        return (w1n, b1n, w2tn, b2n, acc + loss)

    init = (w1_ref[...], b1_ref[...], w2t_ref[...], b2_ref[...],
            jnp.zeros((1, 1), jnp.float32))
    carry = jax.lax.fori_loop(0, n_repeats, one_repeat, init, unroll=True)
    # written exactly once (mean over repeats)
    loss_ref[...] = carry[4] * (1.0 / n_repeats)


def fused_repeat_loop(params, x_train, y_train, x_val, y_val, n_repeats):
    w1, b1, w2, b2 = params
    w2t = w2.reshape(1, -1)                 # (H,1) -> (1,H) row vector for the kernel
    arrays = (x_train, y_train, x_val, y_val, w1, b1, w2t, b2)
    kern = functools.partial(_fused_repeats_kernel, lr=LR, eps=ADAM_EPS,
                             n_repeats=n_repeats)
    return pl.pallas_call(
        kern,
        out_shape=jax.ShapeDtypeStruct((1, 1), jnp.float32),
        in_specs=[_VMEM] * len(arrays),
        out_specs=_VMEM,
    )(*[a.astype(jnp.float32) for a in arrays])


# -------------------------- GP rollout (glue around the Gram kernel) -------
def sample_conditional_mean_gp(x_init, y_init, x_rem, batch_size):
    y_context = jnp.repeat(y_init.astype(jnp.float32), batch_size)    # repeat_interleave
    x_context = x_init.astype(jnp.float32)
    if x_rem is None or x_rem.shape[0] == 0:
        return x_context, y_context

    n0 = x_context.shape[0]
    all_x = jnp.concatenate([x_context, x_rem.astype(jnp.float32)], axis=0)
    # One Pallas call for the full Gram matrix (diagonal noise already added).
    gram = rbf_gram_with_noise(all_x)

    # Conditioning a GP on a fantasy target equal to its own posterior mean
    # leaves every subsequent posterior mean unchanged (block-inverse identity:
    # the appended alpha entry is exactly 0).  The sequential gen_window rollout
    # therefore collapses EXACTLY to one posterior solve against the initial
    # context:  y_fantasy = K(X_rem, X_init) @ (K(X_init,X_init)+noise I)^-1 y.
    k_init = gram[:n0, :n0]                 # noisy train block (SPD)
    k_cross = gram[n0:, :n0]                # noise-free cross block
    # TODO(synk): small dense Cholesky/triangular solve has no clean Pallas
    # equivalent; this single n0 x n0 SPD solve stays in plain JAX.
    chol = jnp.linalg.cholesky(k_init)
    alpha = jsl.cho_solve((chol, True), y_context[:, None])            # (n0, 1)
    y_fantasy = (k_cross @ alpha)[:, 0]                                # (gen_window,)
    return all_x, jnp.concatenate([y_context, y_fantasy], axis=0)


# ---------------------- UtilityFunction.forward equivalent -----------------
@functools.partial(jax.jit, static_argnames=("n_repeats", "batch_size"))
def utility_function_forward(params, x_init, y_init, x_rem, x_val, y_val,
                             n_repeats=N_REPEATS, batch_size=BATCH_SIZE):
    x_val = x_val.astype(jnp.float32)
    y_val = y_val.astype(jnp.float32)
    # np.random.seed(seed) in the reference has no effect on the conditional-
    # MEAN GP rollout, so it is identical for every repeat -> computed once.
    new_x, new_y = sample_conditional_mean_gp(x_init, y_init, x_rem, batch_size)
    x_train = new_x.reshape(-1, batch_size).astype(jnp.float32)       # X.view(-1, batch_size)
    y_train = new_y.reshape(-1, 1).astype(jnp.float32)
    # Single fused pallas_call running all n_repeats (train step + val forward
    # + MSE) with register-carried params; returns mean(loss_list).
    mean_loss = fused_repeat_loop(params, x_train, y_train, x_val, y_val, n_repeats)
    return mean_loss.reshape(1, 1)


if __name__ == "__main__":
    key = jax.random.PRNGKey(0)
    k1, k2, k3, k4, k5, kw1, kw2 = jax.random.split(key, 7)

    n_init_groups = 2
    # X_init rows = len(y_init) * batch_size so that repeat_interleave matches.
    x_init = jax.random.normal(k1, (n_init_groups * BATCH_SIZE, BATCH_SIZE), jnp.float32)
    y_init = jax.random.normal(k2, (n_init_groups,), jnp.float32)
    x_rem = jax.random.normal(k3, (3, BATCH_SIZE), jnp.float32)
    x_val = jax.random.normal(k4, (6, BATCH_SIZE), jnp.float32)
    y_val = jax.random.normal(k5, (6, 1), jnp.float32)

    # deterministic classifier parameters (Linear(D,H) -> ReLU -> Linear(H,1))
    params = (
        0.1 * jax.random.normal(kw1, (BATCH_SIZE, HIDDEN), jnp.float32),  # W1
        jnp.zeros((1, HIDDEN), jnp.float32),                              # b1
        0.1 * jax.random.normal(kw2, (HIDDEN, 1), jnp.float32),           # W2
        jnp.zeros((1, 1), jnp.float32),                                   # b2
    )

    out = utility_function_forward(params, x_init, y_init, x_rem, x_val, y_val)
    out = jax.block_until_ready(out)
    assert out.shape == (1, 1) and out.dtype == jnp.float32
    assert bool(jnp.isfinite(out).all())
    print("KERNEL_OK")
</pallas_src>

<mosaic_0001>
module attributes {stable_mosaic.version = 11 : i64} {
  func.func @_rbf_gram_kernel(%arg0: memref<11x4xf32, #tpu.memory_space<vmem>>, %arg1: memref<11x11xf32, #tpu.memory_space<vmem>>) attributes {dimension_semantics = [], scalar_prefetch = 0 : i64, scratch_operands = 0 : i64, tpu.core_type = #tpu.core_type<tc>} {
    %c0 = arith.constant 0 : index
    %c0_0 = arith.constant 0 : index
    %0 = vector.load %arg0[%c0, %c0_0] : memref<11x4xf32, #tpu.memory_space<vmem>>, vector<11x4xf32>
    %1 = arith.mulf %0, %0 : vector<11x4xf32>
    %cst = arith.constant 1.000000e+00 : f32
    %2 = vector.broadcast %cst : f32 to vector<1x4xf32>
    %cst_1 = arith.constant dense<0.000000e+00> : vector<11xf32>
    %3 = vector.multi_reduction <add>, %1, %cst_1 [1] : vector<11x4xf32> to vector<11xf32>
    %4 = vector.shape_cast %3 : vector<11xf32> to vector<11x1xf32>
    %cst_2 = arith.constant dense<0.000000e+00> : vector<1x11xf32>
    %5 = tpu.matmul %2, %1, %cst_2 {dimension_numbers = #tpu.dot_dimension_numbers<[1], [1], [0], [0], [0, 0, 1, 0], [], []>} : vector<1x4xf32>, vector<11x4xf32>, vector<1x11xf32> -> vector<1x11xf32>
    %cst_3 = arith.constant dense<0.000000e+00> : vector<11x11xf32>
    %6 = tpu.matmul %0, %0, %cst_3 {dimension_numbers = #tpu.dot_dimension_numbers<[1], [1], [0], [0], [0, 0, 1, 0], [], []>} : vector<11x4xf32>, vector<11x4xf32>, vector<11x11xf32> -> vector<11x11xf32>
    %7 = vector.broadcast %4 : vector<11x1xf32> to vector<11x11xf32>
    %8 = vector.broadcast %5 : vector<1x11xf32> to vector<11x11xf32>
    %9 = arith.addf %7, %8 : vector<11x11xf32>
    %cst_4 = arith.constant 2.000000e+00 : f32
    %10 = vector.broadcast %cst_4 : f32 to vector<11x11xf32>
    %11 = arith.mulf %10, %6 : vector<11x11xf32>
    %12 = arith.subf %9, %11 : vector<11x11xf32>
    %cst_5 = arith.constant 0.000000e+00 : f32
    %13 = vector.broadcast %cst_5 : f32 to vector<11x11xf32>
    %14 = arith.maximumf %12, %13 : vector<11x11xf32>
    %cst_6 = arith.constant -5.000000e-01 : f32
    %15 = vector.broadcast %cst_6 : f32 to vector<11x11xf32>
    %16 = arith.mulf %15, %14 : vector<11x11xf32>
    %cst_7 = arith.constant 1.000000e+00 : f32
    %17 = vector.broadcast %cst_7 : f32 to vector<11x11xf32>
    %18 = arith.divf %16, %17 : vector<11x11xf32>
    %19 = math.exp %18 : vector<11x11xf32>
    %cst_8 = arith.constant 1.000000e+00 : f32
    %20 = vector.broadcast %cst_8 : f32 to vector<11x11xf32>
    %21 = arith.mulf %20, %19 : vector<11x11xf32>
    %22 = tpu.iota {dimensions = array<i32: 0>} : vector<11x11xi32>
    %23 = tpu.iota {dimensions = array<i32: 1>} : vector<11x11xi32>
    %24 = arith.cmpi eq, %22, %23 : vector<11x11xi32>
    %cst_9 = arith.constant 1.000000e-01 : f32
    %cst_10 = arith.constant 0.000000e+00 : f32
    %25 = vector.broadcast %cst_9 : f32 to vector<11x11xf32>
    %26 = vector.broadcast %cst_10 : f32 to vector<11x11xf32>
    %27 = arith.select %24, %25, %26 : vector<11x11xi1>, vector<11x11xf32>
    %28 = arith.addf %21, %27 : vector<11x11xf32>
    %c0_11 = arith.constant 0 : index
    %c0_12 = arith.constant 0 : index
    %29 = vector.load %arg1[%c0_11, %c0_12] : memref<11x11xf32, #tpu.memory_space<vmem>>, vector<11x11xf32>
    tpu.vector_store %arg1[%c0_11, %c0_12], %28 {strides = array<i32>} : memref<11x11xf32, #tpu.memory_space<vmem>>, vector<11x11xf32>,
    return
  }
}

module attributes {stable_mosaic.version = 11 : i64} {
  func.func @_fused_repeats_kernel(%arg0: memref<11x4xf32, #tpu.memory_space<vmem>>, %arg1: memref<11x1xf32, #tpu.memory_space<vmem>>, %arg2: memref<6x4xf32, #tpu.memory_space<vmem>>, %arg3: memref<6x1xf32, #tpu.memory_space<vmem>>, %arg4: memref<4x8xf32, #tpu.memory_space<vmem>>, %arg5: memref<1x8xf32, #tpu.memory_space<vmem>>, %arg6: memref<1x8xf32, #tpu.memory_space<vmem>>, %arg7: memref<1x1xf32, #tpu.memory_space<vmem>>, %arg8: memref<1x1xf32, #tpu.memory_space<vmem>>) attributes {dimension_semantics = [], scalar_prefetch = 0 : i64, scratch_operands = 0 : i64, tpu.core_type = #tpu.core_type<tc>} {
    %c0 = arith.constant 0 : index
    %c0_0 = arith.constant 0 : index
    %0 = vector.load %arg0[%c0, %c0_0] : memref<11x4xf32, #tpu.memory_space<vmem>>, vector<11x4xf32>
    %c0_1 = arith.constant 0 : index
    %c0_2 = arith.constant 0 : index
    %1 = vector.load %arg1[%c0_1, %c0_2] : memref<11x1xf32, #tpu.memory_space<vmem>>, vector<11x1xf32>
    %c0_3 = arith.constant 0 : index
    %c0_4 = arith.constant 0 : index
    %2 = vector.load %arg2[%c0_3, %c0_4] : memref<6x4xf32, #tpu.memory_space<vmem>>, vector<6x4xf32>
    %c0_5 = arith.constant 0 : index
    %c0_6 = arith.constant 0 : index
    %3 = vector.load %arg3[%c0_5, %c0_6] : memref<6x1xf32, #tpu.memory_space<vmem>>, vector<6x1xf32>
    %c0_7 = arith.constant 0 : index
    %c0_8 = arith.constant 0 : index
    %4 = vector.load %arg4[%c0_7, %c0_8] : memref<4x8xf32, #tpu.memory_space<vmem>>, vector<4x8xf32>
    %c0_9 = arith.constant 0 : index
    %c0_10 = arith.constant 0 : index
    %5 = vector.load %arg5[%c0_9, %c0_10] : memref<1x8xf32, #tpu.memory_space<vmem>>, vector<1x8xf32>
    %c0_11 = arith.constant 0 : index
    %c0_12 = arith.constant 0 : index
    %6 = vector.load %arg6[%c0_11, %c0_12] : memref<1x8xf32, #tpu.memory_space<vmem>>, vector<1x8xf32>
    %c0_13 = arith.constant 0 : index
    %c0_14 = arith.constant 0 : index
    %7 = vector.load %arg7[%c0_13, %c0_14] : memref<1x1xf32, #tpu.memory_space<vmem>>, vector<1x1xf32>
    %cst = arith.constant 0.000000e+00 : f32
    %8 = vector.broadcast %cst : f32 to vector<1x1xf32>
    %c0_i32 = arith.constant 0 : i32
    %cst_15 = arith.constant dense<0.000000e+00> : vector<11x8xf32>
    %9 = tpu.matmul %0, %4, %cst_15 {dimension_numbers = #tpu.dot_dimension_numbers<[1], [0], [0], [1], [0, 0, 1, 1], [], []>} : vector<11x4xf32>, vector<4x8xf32>, vector<11x8xf32> -> vector<11x8xf32>
    %10 = vector.broadcast %5 : vector<1x8xf32> to vector<11x8xf32>
    %11 = arith.addf %9, %10 : vector<11x8xf32>
    %cst_16 = arith.constant 0.000000e+00 : f32
    %12 = vector.broadcast %cst_16 : f32 to vector<11x8xf32>
    %13 = arith.maximumf %11, %12 : vector<11x8xf32>
    %14 = vector.broadcast %6 : vector<1x8xf32> to vector<11x8xf32>
    %15 = arith.mulf %13, %14 : vector<11x8xf32>
    %cst_17 = arith.constant dense<0.000000e+00> : vector<11xf32>
    %16 = vector.multi_reduction <add>, %15, %cst_17 [1] : vector<11x8xf32> to vector<11xf32>
    %17 = vector.shape_cast %16 : vector<11xf32> to vector<11x1xf32>
    %18 = vector.broadcast %7 : vector<1x1xf32> to vector<11x1xf32>
    %19 = arith.addf %17, %18 : vector<11x1xf32>
    %20 = arith.subf %19, %1 : vector<11x1xf32>
    %cst_18 = arith.constant 0.181818187 : f32
    %21 = vector.broadcast %cst_18 : f32 to vector<11x1xf32>
    %22 = arith.mulf %21, %20 : vector<11x1xf32>
    %23 = vector.broadcast %22 : vector<11x1xf32> to vector<11x8xf32>
    %24 = arith.mulf %23, %13 : vector<11x8xf32>
    %cst_19 = arith.constant dense<0.000000e+00> : vector<8xf32>
    %25 = vector.multi_reduction <add>, %24, %cst_19 [0] : vector<11x8xf32> to vector<8xf32>
    %26 = vector.shape_cast %25 : vector<8xf32> to vector<1x8xf32>
    %cst_20 = arith.constant dense<0.000000e+00> : vector<1xf32>
    %27 = vector.multi_reduction <add>, %22, %cst_20 [0] : vector<11x1xf32> to vector<1xf32>
    %28 = vector.shape_cast %27 : vector<1xf32> to vector<1x1xf32>
    %29 = vector.broadcast %22 : vector<11x1xf32> to vector<11x8xf32>
    %30 = vector.broadcast %6 : vector<1x8xf32> to vector<11x8xf32>
    %31 = arith.mulf %29, %30 : vector<11x8xf32>
    %cst_21 = arith.constant 0.000000e+00 : f32
    %32 = vector.broadcast %cst_21 : f32 to vector<11x8xf32>
    %33 = arith.cmpf ogt, %11, %32 : vector<11x8xf32>
    %cst_22 = arith.constant 0.000000e+00 : f32
    %34 = vector.broadcast %cst_22 : f32 to vector<11x8xf32>
    %35 = arith.select %33, %31, %34 : vector<11x8xi1>, vector<11x8xf32>
    %cst_23 = arith.constant dense<0.000000e+00> : vector<4x8xf32>
    %36 = tpu.matmul %0, %35, %cst_23 {dimension_numbers = #tpu.dot_dimension_numbers<[0], [0], [1], [1], [0, 1, 1, 1], [], []>} : vector<11x4xf32>, vector<11x8xf32>, vector<4x8xf32> -> vector<4x8xf32>
    %cst_24 = arith.constant dense<0.000000e+00> : vector<8xf32>
    %37 = vector.multi_reduction <add>, %35, %cst_24 [0] : vector<11x8xf32> to vector<8xf32>
    %38 = vector.shape_cast %37 : vector<8xf32> to vector<1x8xf32>
    %cst_25 = arith.constant 1.000000e-03 : f32
    %39 = vector.broadcast %cst_25 : f32 to vector<4x8xf32>
    %40 = arith.mulf %39, %36 : vector<4x8xf32>
    %41 = math.absf %36 : vector<4x8xf32>
    %cst_26 = arith.constant 9.99999993E-9 : f32
    %42 = vector.broadcast %cst_26 : f32 to vector<4x8xf32>
    %43 = arith.addf %41, %42 : vector<4x8xf32>
    %44 = arith.divf %40, %43 : vector<4x8xf32>
    %45 = arith.subf %4, %44 : vector<4x8xf32>
    %cst_27 = arith.constant 1.000000e-03 : f32
    %46 = vector.broadcast %cst_27 : f32 to vector<1x8xf32>
    %47 = arith.mulf %46, %38 : vector<1x8xf32>
    %48 = math.absf %38 : vector<1x8xf32>
    %cst_28 = arith.constant 9.99999993E-9 : f32
    %49 = vector.broadcast %cst_28 : f32 to vector<1x8xf32>
    %50 = arith.addf %48, %49 : vector<1x8xf32>
    %51 = arith.divf %47, %50 : vector<1x8xf32>
    %52 = arith.subf %5, %51 : vector<1x8xf32>
    %cst_29 = arith.constant 1.000000e-03 : f32
    %53 = vector.broadcast %cst_29 : f32 to vector<1x8xf32>
    %54 = arith.mulf %53, %26 : vector<1x8xf32>
    %55 = math.absf %26 : vector<1x8xf32>
    %cst_30 = arith.constant 9.99999993E-9 : f32
    %56 = vector.broadcast %cst_30 : f32 to vector<1x8xf32>
    %57 = arith.addf %55, %56 : vector<1x8xf32>
    %58 = arith.divf %54, %57 : vector<1x8xf32>
    %59 = arith.subf %6, %58 : vector<1x8xf32>
    %cst_31 = arith.constant 1.000000e-03 : f32
    %60 = vector.broadcast %cst_31 : f32 to vector<1x1xf32>
    %61 = arith.mulf %60, %28 : vector<1x1xf32>
    %62 = math.absf %28 : vector<1x1xf32>
    %cst_32 = arith.constant 9.99999993E-9 : f32
    %63 = vector.broadcast %cst_32 : f32 to vector<1x1xf32>
    %64 = arith.addf %62, %63 : vector<1x1xf32>
    %65 = arith.divf %61, %64 : vector<1x1xf32>
    %66 = arith.subf %7, %65 : vector<1x1xf32>
    %cst_33 = arith.constant dense<0.000000e+00> : vector<6x8xf32>
    %67 = tpu.matmul %2, %45, %cst_33 {dimension_numbers = #tpu.dot_dimension_numbers<[1], [0], [0], [1], [0, 0, 1, 1], [], []>} : vector<6x4xf32>, vector<4x8xf32>, vector<6x8xf32> -> vector<6x8xf32>
    %68 = vector.broadcast %52 : vector<1x8xf32> to vector<6x8xf32>
    %69 = arith.addf %67, %68 : vector<6x8xf32>
    %cst_34 = arith.constant 0.000000e+00 : f32
    %70 = vector.broadcast %cst_34 : f32 to vector<6x8xf32>
    %71 = arith.maximumf %69, %70 : vector<6x8xf32>
    %72 = vector.broadcast %59 : vector<1x8xf32> to vector<6x8xf32>
    %73 = arith.mulf %71, %72 : vector<6x8xf32>
    %cst_35 = arith.constant dense<0.000000e+00> : vector<6xf32>
    %74 = vector.multi_reduction <add>, %73, %cst_35 [1] : vector<6x8xf32> to vector<6xf32>
    %75 = vector.shape_cast %74 : vector<6xf32> to vector<6x1xf32>
    %76 = vector.broadcast %66 : vector<1x1xf32> to vector<6x1xf32>
    %77 = arith.addf %75, %76 : vector<6x1xf32>
    %78 = arith.subf %77, %3 : vector<6x1xf32>
    %79 = arith.mulf %78, %78 : vector<6x1xf32>
    %cst_36 = arith.constant dense<0.000000e+00> : vector<1xf32>
    %80 = vector.multi_reduction <add>, %79, %cst_36 [0] : vector<6x1xf32> to vector<1xf32>
    %81 = vector.shape_cast %80 : vector<1xf32> to vector<1x1xf32>
    %cst_37 = arith.constant 0.166666672 : f32
    %82 = vector.broadcast %cst_37 : f32 to vector<1x1xf32>
    %83 = arith.mulf %81, %82 : vector<1x1xf32>
    %84 = arith.addf %8, %83 : vector<1x1xf32>
    %c1_i32 = arith.constant 1 : i32
    %cst_38 = arith.constant dense<0.000000e+00> : vector<11x8xf32>
    %85 = tpu.matmul %0, %45, %cst_38 {dimension_numbers = #tpu.dot_dimension_numbers<[1], [0], [0], [1], [0, 0, 1, 1], [], []>} : vector<11x4xf32>, vector<4x8xf32>, vector<11x8xf32> -> vector<11x8xf32>
    %86 = vector.broadcast %52 : vector<1x8xf32> to vector<11x8xf32>
    %87 = arith.addf %85, %86 : vector<11x8xf32>
    %cst_39 = arith.constant 0.000000e+00 : f32
    %88 = vector.broadcast %cst_39 : f32 to vector<11x8xf32>
    %89 = arith.maximumf %87, %88 : vector<11x8xf32>
    %90 = vector.broadcast %59 : vector<1x8xf32> to vector<11x8xf32>
    %91 = arith.mulf %89, %90 : vector<11x8xf32>
    %cst_40 = arith.constant dense<0.000000e+00> : vector<11xf32>
    %92 = vector.multi_reduction <add>, %91, %cst_40 [1] : vector<11x8xf32> to vector<11xf32>
    %93 = vector.shape_cast %92 : vector<11xf32> to vector<11x1xf32>
    %94 = vector.broadcast %66 : vector<1x1xf32> to vector<11x1xf32>
    %95 = arith.addf %93, %94 : vector<11x1xf32>
    %96 = arith.subf %95, %1 : vector<11x1xf32>
    %cst_41 = arith.constant 0.181818187 : f32
    %97 = vector.broadcast %cst_41 : f32 to vector<11x1xf32>
    %98 = arith.mulf %97, %96 : vector<11x1xf32>
    %99 = vector.broadcast %98 : vector<11x1xf32> to vector<11x8xf32>
    %100 = arith.mulf %99, %89 : vector<11x8xf32>
    %cst_42 = arith.constant dense<0.000000e+00> : vector<8xf32>
    %101 = vector.multi_reduction <add>, %100, %cst_42 [0] : vector<11x8xf32> to vector<8xf32>
    %102 = vector.shape_cast %101 : vector<8xf32> to vector<1x8xf32>
    %cst_43 = arith.constant dense<0.000000e+00> : vector<1xf32>
    %103 = vector.multi_reduction <add>, %98, %cst_43 [0] : vector<11x1xf32> to vector<1xf32>
    %104 = vector.shape_cast %103 : vector<1xf32> to vector<1x1xf32>
    %105 = vector.broadcast %98 : vector<11x1xf32> to vector<11x8xf32>
    %106 = vector.broadcast %59 : vector<1x8xf32> to vector<11x8xf32>
    %107 = arith.mulf %105, %106 : vector<11x8xf32>
    %cst_44 = arith.constant 0.000000e+00 : f32
    %108 = vector.broadcast %cst_44 : f32 to vector<11x8xf32>
    %109 = arith.cmpf ogt, %87, %108 : vector<11x8xf32>
    %cst_45 = arith.constant 0.000000e+00 : f32
    %110 = vector.broadcast %cst_45 : f32 to vector<11x8xf32>
    %111 = arith.select %109, %107, %110 : vector<11x8xi1>, vector<11x8xf32>
    %cst_46 = arith.constant dense<0.000000e+00> : vector<4x8xf32>
    %112 = tpu.matmul %0, %111, %cst_46 {dimension_numbers = #tpu.dot_dimension_numbers<[0], [0], [1], [1], [0, 1, 1, 1], [], []>} : vector<11x4xf32>, vector<11x8xf32>, vector<4x8xf32> -> vector<4x8xf32>
    %cst_47 = arith.constant dense<0.000000e+00> : vector<8xf32>
    %113 = vector.multi_reduction <add>, %111, %cst_47 [0] : vector<11x8xf32> to vector<8xf32>
    %114 = vector.shape_cast %113 : vector<8xf32> to vector<1x8xf32>
    %cst_48 = arith.constant 1.000000e-03 : f32
    %115 = vector.broadcast %cst_48 : f32 to vector<4x8xf32>
    %116 = arith.mulf %115, %112 : vector<4x8xf32>
    %117 = math.absf %112 : vector<4x8xf32>
    %cst_49 = arith.constant 9.99999993E-9 : f32
    %118 = vector.broadcast %cst_49 : f32 to vector<4x8xf32>
    %119 = arith.addf %117, %118 : vector<4x8xf32>
    %120 = arith.divf %116, %119 : vector<4x8xf32>
    %121 = arith.subf %45, %120 : vector<4x8xf32>
    %cst_50 = arith.constant 1.000000e-03 : f32
    %122 = vector.broadcast %cst_50 : f32 to vector<1x8xf32>
    %123 = arith.mulf %122, %114 : vector<1x8xf32>
    %124 = math.absf %114 : vector<1x8xf32>
    %cst_51 = arith.constant 9.99999993E-9 : f32
    %125 = vector.broadcast %cst_51 : f32 to vector<1x8xf32>
    %126 = arith.addf %124, %125 : vector<1x8xf32>
    %127 = arith.divf %123, %126 : vector<1x8xf32>
    %128 = arith.subf %52, %127 : vector<1x8xf32>
    %cst_52 = arith.constant 1.000000e-03 : f32
    %129 = vector.broadcast %cst_52 : f32 to vector<1x8xf32>
    %130 = arith.mulf %129, %102 : vector<1x8xf32>
    %131 = math.absf %102 : vector<1x8xf32>
    %cst_53 = arith.constant 9.99999993E-9 : f32
    %132 = vector.broadcast %cst_53 : f32 to vector<1x8xf32>
    %133 = arith.addf %131, %132 : vector<1x8xf32>
    %134 = arith.divf %130, %133 : vector<1x8xf32>
    %135 = arith.subf %59, %134 : vector<1x8xf32>
    %cst_54 = arith.constant 1.000000e-03 : f32
    %136 = vector.broadcast %cst_54 : f32 to vector<1x1xf32>
    %137 = arith.mulf %136, %104 : vector<1x1xf32>
    %138 = math.absf %104 : vector<1x1xf32>
    %cst_55 = arith.constant 9.99999993E-9 : f32
    %139 = vector.broadcast %cst_55 : f32 to vector<1x1xf32>
    %140 = arith.addf %138, %139 : vector<1x1xf32>
    %141 = arith.divf %137, %140 : vector<1x1xf32>
    %142 = arith.subf %66, %141 : vector<1x1xf32>
    %cst_56 = arith.constant dense<0.000000e+00> : vector<6x8xf32>
    %143 = tpu.matmul %2, %121, %cst_56 {dimension_numbers = #tpu.dot_dimension_numbers<[1], [0], [0], [1], [0, 0, 1, 1], [], []>} : vector<6x4xf32>, vector<4x8xf32>, vector<6x8xf32> -> vector<6x8xf32>
    %144 = vector.broadcast %128 : vector<1x8xf32> to vector<6x8xf32>
    %145 = arith.addf %143, %144 : vector<6x8xf32>
    %cst_57 = arith.constant 0.000000e+00 : f32
    %146 = vector.broadcast %cst_57 : f32 to vector<6x8xf32>
    %147 = arith.maximumf %145, %146 : vector<6x8xf32>
    %148 = vector.broadcast %135 : vector<1x8xf32> to vector<6x8xf32>
    %149 = arith.mulf %147, %148 : vector<6x8xf32>
    %cst_58 = arith.constant dense<0.000000e+00> : vector<6xf32>
    %150 = vector.multi_reduction <add>, %149, %cst_58 [1] : vector<6x8xf32> to vector<6xf32>
    %151 = vector.shape_cast %150 : vector<6xf32> to vector<6x1xf32>
    %152 = vector.broadcast %142 : vector<1x1xf32> to vector<6x1xf32>
    %153 = arith.addf %151, %152 : vector<6x1xf32>
    %154 = arith.subf %153, %3 : vector<6x1xf32>
    %155 = arith.mulf %154, %154 : vector<6x1xf32>
    %cst_59 = arith.constant dense<0.000000e+00> : vector<1xf32>
    %156 = vector.multi_reduction <add>, %155, %cst_59 [0] : vector<6x1xf32> to vector<1xf32>
    %157 = vector.shape_cast %156 : vector<1xf32> to vector<1x1xf32>
    %cst_60 = arith.constant 0.166666672 : f32
    %158 = vector.broadcast %cst_60 : f32 to vector<1x1xf32>
    %159 = arith.mulf %157, %158 : vector<1x1xf32>
    %160 = arith.addf %84, %159 : vector<1x1xf32>
    %c2_i32 = arith.constant 2 : i32
    %cst_61 = arith.constant dense<0.000000e+00> : vector<11x8xf32>
    %161 = tpu.matmul %0, %121, %cst_61 {dimension_numbers = #tpu.dot_dimension_numbers<[1], [0], [0], [1], [0, 0, 1, 1], [], []>} : vector<11x4xf32>, vector<4x8xf32>, vector<11x8xf32> -> vector<11x8xf32>
    %162 = vector.broadcast %128 : vector<1x8xf32> to vector<11x8xf32>
    %163 = arith.addf %161, %162 : vector<11x8xf32>
    %cst_62 = arith.constant 0.000000e+00 : f32
    %164 = vector.broadcast %cst_62 : f32 to vector<11x8xf32>
    %165 = arith.maximumf %163, %164 : vector<11x8xf32>
    %166 = vector.broadcast %135 : vector<1x8xf32> to vector<11x8xf32>
    %167 = arith.mulf %165, %166 : vector<11x8xf32>
    %cst_63 = arith.constant dense<0.000000e+00> : vector<11xf32>
    %168 = vector.multi_reduction <add>, %167, %cst_63 [1] : vector<11x8xf32> to vector<11xf32>
    %169 = vector.shape_cast %168 : vector<11xf32> to vector<11x1xf32>
    %170 = vector.broadcast %142 : vector<1x1xf32> to vector<11x1xf32>
    %171 = arith.addf %169, %170 : vector<11x1xf32>
    %172 = arith.subf %171, %1 : vector<11x1xf32>
    %cst_64 = arith.constant 0.181818187 : f32
    %173 = vector.broadcast %cst_64 : f32 to vector<11x1xf32>
    %174 = arith.mulf %173, %172 : vector<11x1xf32>
    %175 = vector.broadcast %174 : vector<11x1xf32> to vector<11x8xf32>
    %176 = arith.mulf %175, %165 : vector<11x8xf32>
    %cst_65 = arith.constant dense<0.000000e+00> : vector<8xf32>
    %177 = vector.multi_reduction <add>, %176, %cst_65 [0] : vector<11x8xf32> to vector<8xf32>
    %178 = vector.shape_cast %177 : vector<8xf32> to vector<1x8xf32>
    %cst_66 = arith.constant dense<0.000000e+00> : vector<1xf32>
    %179 = vector.multi_reduction <add>, %174, %cst_66 [0] : vector<11x1xf32> to vector<1xf32>
    %180 = vector.shape_cast %179 : vector<1xf32> to vector<1x1xf32>
    %181 = vector.broadcast %174 : vector<11x1xf32> to vector<11x8xf32>
    %182 = vector.broadcast %135 : vector<1x8xf32> to vector<11x8xf32>
    %183 = arith.mulf %181, %182 : vector<11x8xf32>
    %cst_67 = arith.constant 0.000000e+00 : f32
    %184 = vector.broadcast %cst_67 : f32 to vector<11x8xf32>
    %185 = arith.cmpf ogt, %163, %184 : vector<11x8xf32>
    %cst_68 = arith.constant 0.000000e+00 : f32
    %186 = vector.broadcast %cst_68 : f32 to vector<11x8xf32>
    %187 = arith.select %185, %183, %186 : vector<11x8xi1>, vector<11x8xf32>
    %cst_69 = arith.constant dense<0.000000e+00> : vector<4x8xf32>
    %188 = tpu.matmul %0, %187, %cst_69 {dimension_numbers = #tpu.dot_dimension_numbers<[0], [0], [1], [1], [0, 1, 1, 1], [], []>} : vector<11x4xf32>, vector<11x8xf32>, vector<4x8xf32> -> vector<4x8xf32>
    %cst_70 = arith.constant dense<0.000000e+00> : vector<8xf32>
    %189 = vector.multi_reduction <add>, %187, %cst_70 [0] : vector<11x8xf32> to vector<8xf32>
    %190 = vector.shape_cast %189 : vector<8xf32> to vector<1x8xf32>
    %cst_71 = arith.constant 1.000000e-03 : f32
    %191 = vector.broadcast %cst_71 : f32 to vector<4x8xf32>
    %192 = arith.mulf %191, %188 : vector<4x8xf32>
    %193 = math.absf %188 : vector<4x8xf32>
    %cst_72 = arith.constant 9.99999993E-9 : f32
    %194 = vector.broadcast %cst_72 : f32 to vector<4x8xf32>
    %195 = arith.addf %193, %194 : vector<4x8xf32>
    %196 = arith.divf %192, %195 : vector<4x8xf32>
    %197 = arith.subf %121, %196 : vector<4x8xf32>
    %cst_73 = arith.constant 1.000000e-03 : f32
    %198 = vector.broadcast %cst_73 : f32 to vector<1x8xf32>
    %199 = arith.mulf %198, %190 : vector<1x8xf32>
    %200 = math.absf %190 : vector<1x8xf32>
    %cst_74 = arith.constant 9.99999993E-9 : f32
    %201 = vector.broadcast %cst_74 : f32 to vector<1x8xf32>
    %202 = arith.addf %200, %201 : vector<1x8xf32>
    %203 = arith.divf %199, %202 : vector<1x8xf32>
    %204 = arith.subf %128, %203 : vector<1x8xf32>
    %cst_75 = arith.constant 1.000000e-03 : f32
    %205 = vector.broadcast %cst_75 : f32 to vector<1x8xf32>
    %206 = arith.mulf %205, %178 : vector<1x8xf32>
    %207 = math.absf %178 : vector<1x8xf32>
    %cst_76 = arith.constant 9.99999993E-9 : f32
    %208 = vector.broadcast %cst_76 : f32 to vector<1x8xf32>
    %209 = arith.addf %207, %208 : vector<1x8xf32>
    %210 = arith.divf %206, %209 : vector<1x8xf32>
    %211 = arith.subf %135, %210 : vector<1x8xf32>
    %cst_77 = arith.constant 1.000000e-03 : f32
    %212 = vector.broadcast %cst_77 : f32 to vector<1x1xf32>
    %213 = arith.mulf %212, %180 : vector<1x1xf32>
    %214 = math.absf %180 : vector<1x1xf32>
    %cst_78 = arith.constant 9.99999993E-9 : f32
    %215 = vector.broadcast %cst_78 : f32 to vector<1x1xf32>
    %216 = arith.addf %214, %215 : vector<1x1xf32>
    %217 = arith.divf %213, %216 : vector<1x1xf32>
    %218 = arith.subf %142, %217 : vector<1x1xf32>
    %cst_79 = arith.constant dense<0.000000e+00> : vector<6x8xf32>
    %219 = tpu.matmul %2, %197, %cst_79 {dimension_numbers = #tpu.dot_dimension_numbers<[1], [0], [0], [1], [0, 0, 1, 1], [], []>} : vector<6x4xf32>, vector<4x8xf32>, vector<6x8xf32> -> vector<6x8xf32>
    %220 = vector.broadcast %204 : vector<1x8xf32> to vector<6x8xf32>
    %221 = arith.addf %219, %220 : vector<6x8xf32>
    %cst_80 = arith.constant 0.000000e+00 : f32
    %222 = vector.broadcast %cst_80 : f32 to vector<6x8xf32>
    %223 = arith.maximumf %221, %222 : vector<6x8xf32>
    %224 = vector.broadcast %211 : vector<1x8xf32> to vector<6x8xf32>
    %225 = arith.mulf %223, %224 : vector<6x8xf32>
    %cst_81 = arith.constant dense<0.000000e+00> : vector<6xf32>
    %226 = vector.multi_reduction <add>, %225, %cst_81 [1] : vector<6x8xf32> to vector<6xf32>
    %227 = vector.shape_cast %226 : vector<6xf32> to vector<6x1xf32>
    %228 = vector.broadcast %218 : vector<1x1xf32> to vector<6x1xf32>
    %229 = arith.addf %227, %228 : vector<6x1xf32>
    %230 = arith.subf %229, %3 : vector<6x1xf32>
    %231 = arith.mulf %230, %230 : vector<6x1xf32>
    %cst_82 = arith.constant dense<0.000000e+00> : vector<1xf32>
    %232 = vector.multi_reduction <add>, %231, %cst_82 [0] : vector<6x1xf32> to vector<1xf32>
    %233 = vector.shape_cast %232 : vector<1xf32> to vector<1x1xf32>
    %cst_83 = arith.constant 0.166666672 : f32
    %234 = vector.broadcast %cst_83 : f32 to vector<1x1xf32>
    %235 = arith.mulf %233, %234 : vector<1x1xf32>
    %236 = arith.addf %160, %235 : vector<1x1xf32>
    %cst_84 = arith.constant 0.333333343 : f32
    %237 = vector.broadcast %cst_84 : f32 to vector<1x1xf32>
    %238 = arith.mulf %236, %237 : vector<1x1xf32>
    %c0_85 = arith.constant 0 : index
    %c0_86 = arith.constant 0 : index
    %239 = vector.load %arg8[%c0_85, %c0_86] : memref<1x1xf32, #tpu.memory_space<vmem>>, vector<1x1xf32>
    tpu.vector_store %arg8[%c0_85, %c0_86], %238 {strides = array<i32>} : memref<1x1xf32, #tpu.memory_space<vmem>>, vector<1x1xf32>,
    return
  }
}

</mosaic_0001>

<llo_original>
// kernel: custom-call.6
$region0: #{custom-call.6}
  %s0 = inlined_call_operand.vmem [shape: f32[8,8], index: 0, kind: input, shape index: {}]
  %s1 = inlined_call_operand.vmem [shape: f32[8,8], index: 1, kind: output, shape index: {}]
  $region1: #{custom-call.6} parent=0
    #allocation0 [shape = 'u8[4096]{0}', space=vmem, size = 0x1000, scoped, tag = 'operand span for operand 0']
    #allocation1 [shape = 'u8[4096]{0}', space=vmem, size = 0x1000, scoped, tag = 'operand span for operand 1']
    // Predicated region
    $region2: #{custom-call.6} parent=1 // pred_check
      _
    $region3: #{custom-call.6} parent=1 // pred_check_branch
      %3 = sbr.rel (0) target = $region5
    $region4: #{custom-call.6} parent=1 // pred_region
      // Predicated region
      $region6: #{custom-call.6} parent=4 // pred_check
        _
      $region7: #{custom-call.6} parent=4 // pred_check_branch
        %5 = sbr.rel (0) target = $region9
      $region8: #{custom-call.6} parent=4 // pred_region
        // Predicated region
        $region21: #{custom-call.6} parent=8 // pred_check
          _
        $region22: #{custom-call.6} parent=8 // pred_check_branch
          %21 = sbr.rel (0) target = $region24
        $region23: #{custom-call.6} parent=8 // pred_region
          loop: start=0, step=1, limit=1
          $region25: #{custom-call.6} parent=23 // loop_pre_header
            _
          $region26: #{custom-call.6} parent=23 // loop_header
            %s23 = sphi 0, %s27
            %p24 = scmp.ge.s32.totalorder %s23, 1
            %s28 = sphi %s0, %s0
            %s29 = sphi [#allocation0], [#allocation0]
          $region27: #{custom-call.6} parent=23 // loop_header_branch
            %26 = sbr.rel (%p24) target = $region31
          $region28: #{custom-call.6} parent=23 // loop_body
            %v30 = vld [vmem:[%s28] sm:$0xff]
            %31 = vst [vmem:[%s29] sm:$0xff] %v30
          $region29: #{custom-call.6} parent=23 // loop_footer
            %s27 = sadd.s32 1, %s23
          $region30: #{custom-call.6} parent=23 // loop_footer_branch
            %22 = sbr.rel target = $region26
          $region31: #{custom-call.6} parent=23 // loop_exit
            _
        $region24: #{custom-call.6} parent=8 // pred_fallthru
          _
        // Predicated region
        $region32: #{custom-call.6} parent=8 // pred_check
          _
        $region33: #{custom-call.6} parent=8 // pred_check_branch
          %33 = sbr.rel target = $region35
        $region34: #{custom-call.6} parent=8 // pred_region
          _
        $region35: #{custom-call.6} parent=8 // pred_fallthru
          _
      $region9: #{custom-call.6} parent=4 // pred_fallthru
        _
      // Predicated region
      $region10: #{custom-call.6} parent=4 // pred_check
        _
      $region11: #{custom-call.6} parent=4 // pred_check_branch
        %7 = sbr.rel target = $region13
      $region12: #{custom-call.6} parent=4 // pred_region
        %s9 = ssub.s32 256, 1
        loop: start=0, step=1, limit=1
        $region14: #{custom-call.6} parent=12 // loop_pre_header
          _
        $region15: #{custom-call.6} parent=12 // loop_header
          %s11 = sphi 0, %s15
          %p12 = scmp.ge.s32.totalorder %s11, 1
          %s16 = sphi %s0, %s0
          %s17 = sphi [#allocation0], [#allocation0]
        $region16: #{custom-call.6} parent=12 // loop_header_branch
          %14 = sbr.rel (%p12) target = $region20
        $region17: #{custom-call.6} parent=12 // loop_body
          %v18 = vld [vmem:[%s16] sm:%s9]
          %19 = vst [vmem:[%s17] sm:%s9] %v18
        $region18: #{custom-call.6} parent=12 // loop_footer
          %s15 = sadd.s32 1, %s11
        $region19: #{custom-call.6} parent=12 // loop_footer_branch
          %10 = sbr.rel target = $region15
        $region20: #{custom-call.6} parent=12 // loop_exit
          _
      $region13: #{custom-call.6} parent=4 // pred_fallthru
        _
    $region5: #{custom-call.6} parent=1 // pred_fallthru
      _
    %34 = vnop
    %35 = vst [vmem:[#allocation1] sm:$0xff] 0.0
    %vm36 = vcmask 7168
    %v37 = vld [vmem:[#allocation1] ss:$0 sm:$0xff]
    %v38 = vld [vmem:[#allocation0] ss:$0 sm:$0xff]
    %v39 = vmul.f32 %v37, %v37
    %40 = vadd.xlane.f32.xlu0 %v39
    %v41 = vpop.xlane.xlu0 %40
    %v42 = vsub.f32 %v38, %v41
    %v43 = vrsqrt.pop %v42
    %v44 = vmul.f32 %v43, %v42
    %v45 = vmul.f32 %v44, %v43
    %v46 = vmul.f32 0.5, %v45
    %v47 = vsub.f32 1.5, %v46
    %v48 = vmul.f32 %v43, %v47
    %vm49 = vweird.f32 %v42
    %vm50 = vweird.f32 %v43
    %vm51 = vmor %vm49, %vm50
    %v52 = vsel %vm51, %v43, %v48
    %v53 = vld [vmem:[#allocation0] sm:$0xff]
    %v54 = vld [vmem:[#allocation1] sm:$0xff]
    %v55 = vmul.f32 %v54, %v37
    %56 = vadd.xlane.f32.xlu0 %v55
    %v57 = vpop.xlane.xlu0 %56
    %v58 = vsub.f32 %v53, %v57
    %v59 = vmul.f32 %v58, %v52
    %v60 = vsel %vm36, %v59, 0.0
    %v61 = vadd.f32 %v54, %v60
    %62 = vst [vmem:[#allocation1] sm:$0xff] %v61
    %vm63 = vcmask 15368
    %s64 = scalar_lea.vmem [#allocation1], 1
    %v65 = vld [vmem:[%s64] ss:$0 sm:$0xff]
    %s66 = scalar_lea.vmem [#allocation0], 1
    %v67 = vld [vmem:[%s66] ss:$0 sm:$0xff]
    %v68 = vmul.f32 %v65, %v65
    %69 = vadd.xlane.f32.xlu0 %v68
    %v70 = vpop.xlane.xlu0 %69
    %v71 = vsub.f32 %v67, %v70
    %v72 = vrsqrt.pop %v71
    %v73 = vmul.f32 %v72, %v71
    %v74 = vmul.f32 %v73, %v72
    %v75 = vmul.f32 0.5, %v74
    %v76 = vsub.f32 1.5, %v75
    %v77 = vmul.f32 %v72, %v76
    %vm78 = vweird.f32 %v71
    %vm79 = vweird.f32 %v72
    %vm80 = vmor %vm78, %vm79
    %v81 = vsel %vm80, %v72, %v77
    %v82 = vld [vmem:[#allocation0] sm:$0xff]
    %v83 = vld [vmem:[#allocation1] sm:$0xff]
    %v84 = vmul.f32 %v83, %v65
    %85 = vadd.xlane.f32.xlu0 %v84
    %v86 = vpop.xlane.xlu0 %85
    %v87 = vsub.f32 %v82, %v86
    %v88 = vmul.f32 %v87, %v81
    %vm89 = vcmask 1047553
    %vm90 = vmand %vm63, %vm89
    %v91 = vsel %vm90, %v88, 0.0
    %v92 = vadd.f32 %v83, %v91
    %93 = vst [vmem:[#allocation1] sm:$0xff] %v92
    %vm94 = vcmask 23568
    %s95 = scalar_lea.vmem [#allocation1], 2
    %v96 = vld [vmem:[%s95] ss:$0 sm:$0xff]
    %s97 = scalar_lea.vmem [#allocation0], 2
    %v98 = vld [vmem:[%s97] ss:$0 sm:$0xff]
    %v99 = vmul.f32 %v96, %v96
    %100 = vadd.xlane.f32.xlu0 %v99
    %v101 = vpop.xlane.xlu0 %100
    %v102 = vsub.f32 %v98, %v101
    %v103 = vrsqrt.pop %v102
    %v104 = vmul.f32 %v103, %v102
    %v105 = vmul.f32 %v104, %v103
    %v106 = vmul.f32 0.5, %v105
    %v107 = vsub.f32 1.5, %v106
    %v108 = vmul.f32 %v103, %v107
    %vm109 = vweird.f32 %v102
    %vm110 = vweird.f32 %v103
    %vm111 = vmor %vm109, %vm110
    %v112 = vsel %vm111, %v103, %v108
    %v113 = vld [vmem:[#allocation0] sm:$0xff]
    %v114 = vld [vmem:[#allocation1] sm:$0xff]
    %v115 = vmul.f32 %v114, %v96
    %116 = vadd.xlane.f32.xlu0 %v115
    %v117 = vpop.xlane.xlu0 %116
    %v118 = vsub.f32 %v113, %v117
    %v119 = vmul.f32 %v118, %v112
    %vm120 = vcmask 1047554
    %vm121 = vmand %vm94, %vm120
    %v122 = vsel %vm121, %v119, 0.0
    %v123 = vadd.f32 %v114, %v122
    %124 = vst [vmem:[#allocation1] sm:$0xff] %v123
    %vm125 = vcmask 31768
    %s126 = scalar_lea.vmem [#allocation1], 3
    %v127 = vld [vmem:[%s126] ss:$0 sm:$0xff]
    %s128 = scalar_lea.vmem [#allocation0], 3
    %v129 = vld [vmem:[%s128] ss:$0 sm:$0xff]
    %v130 = vmul.f32 %v127, %v127
    %131 = vadd.xlane.f32.xlu0 %v130
    %v132 = vpop.xlane.xlu0 %131
    %v133 = vsub.f32 %v129, %v132
    %v134 = vrsqrt.pop %v133
    %v135 = vmul.f32 %v134, %v133
    %v136 = vmul.f32 %v135, %v134
    %v137 = vmul.f32 0.5, %v136
    %v138 = vsub.f32 1.5, %v137
    %v139 = vmul.f32 %v134, %v138
    %vm140 = vweird.f32 %v133
    %vm141 = vweird.f32 %v134
    %vm142 = vmor %vm140, %vm141
    %v143 = vsel %vm142, %v134, %v139
    %v144 = vld [vmem:[#allocation0] sm:$0xff]
    %v145 = vld [vmem:[#allocation1] sm:$0xff]
    %v146 = vmul.f32 %v145, %v127
    %147 = vadd.xlane.f32.xlu0 %v146
    %v148 = vpop.xlane.xlu0 %147
    %v149 = vsub.f32 %v144, %v148
    %v150 = vmul.f32 %v149, %v143
    %vm151 = vcmask 1047555
    %vm152 = vmand %vm125, %vm151
    %v153 = vsel %vm152, %v150, 0.0
    %v154 = vadd.f32 %v145, %v153
    %155 = vst [vmem:[#allocation1] sm:$0xff] %v154
    %vm156 = vcmask 39968
    %s157 = scalar_lea.vmem [#allocation1], 4
    %v158 = vld [vmem:[%s157] ss:$0 sm:$0xff]
    %s159 = scalar_lea.vmem [#allocation0], 4
    %v160 = vld [vmem:[%s159] ss:$0 sm:$0xff]
    %v161 = vmul.f32 %v158, %v158
    %162 = vadd.xlane.f32.xlu0 %v161
    %v163 = vpop.xlane.xlu0 %162
    %v164 = vsub.f32 %v160, %v163
    %v165 = vrsqrt.pop %v164
    %v166 = vmul.f32 %v165, %v164
    %v167 = vmul.f32 %v166, %v165
    %v168 = vmul.f32 0.5, %v167
    %v169 = vsub.f32 1.5, %v168
    %v170 = vmul.f32 %v165, %v169
    %vm171 = vweird.f32 %v164
    %vm172 = vweird.f32 %v165
    %vm173 = vmor %vm171, %vm172
    %v174 = vsel %vm173, %v165, %v170
    %v175 = vld [vmem:[#allocation0] sm:$0xff]
    %v176 = vld [vmem:[#allocation1] sm:$0xff]
    %v177 = vmul.f32 %v176, %v158
    %178 = vadd.xlane.f32.xlu0 %v177
    %v179 = vpop.xlane.xlu0 %178
    %v180 = vsub.f32 %v175, %v179
    %v181 = vmul.f32 %v180, %v174
    %vm182 = vcmask 1047556
    %vm183 = vmand %vm156, %vm182
    %v184 = vsel %vm183, %v181, 0.0
    %v185 = vadd.f32 %v176, %v184
    %186 = vst [vmem:[#allocation1] sm:$0xff] %v185
    %vm187 = vcmask 48168
    %s188 = scalar_lea.vmem [#allocation1], 5
    %v189 = vld [vmem:[%s188] ss:$0 sm:$0xff]
    %s190 = scalar_lea.vmem [#allocation0], 5
    %v191 = vld [vmem:[%s190] ss:$0 sm:$0xff]
    %v192 = vmul.f32 %v189, %v189
    %193 = vadd.xlane.f32.xlu0 %v192
    %v194 = vpop.xlane.xlu0 %193
    %v195 = vsub.f32 %v191, %v194
    %v196 = vrsqrt.pop %v195
    %v197 = vmul.f32 %v196, %v195
    %v198 = vmul.f32 %v197, %v196
    %v199 = vmul.f32 0.5, %v198
    %v200 = vsub.f32 1.5, %v199
    %v201 = vmul.f32 %v196, %v200
    %vm202 = vweird.f32 %v195
    %vm203 = vweird.f32 %v196
    %vm204 = vmor %vm202, %vm203
    %v205 = vsel %vm204, %v196, %v201
    %v206 = vld [vmem:[#allocation0] sm:$0xff]
    %v207 = vld [vmem:[#allocation1] sm:$0xff]
    %v208 = vmul.f32 %v207, %v189
    %209 = vadd.xlane.f32.xlu0 %v208
    %v210 = vpop.xlane.xlu0 %209
    %v211 = vsub.f32 %v206, %v210
    %v212 = vmul.f32 %v211, %v205
    %vm213 = vcmask 1047557
    %vm214 = vmand %vm187, %vm213
    %v215 = vsel %vm214, %v212, 0.0
    %v216 = vadd.f32 %v207, %v215
    %217 = vst [vmem:[#allocation1] sm:$0xff] %v216
    %vm218 = vcmask 56368
    %s219 = scalar_lea.vmem [#allocation1], 6
    %v220 = vld [vmem:[%s219] ss:$0 sm:$0xff]
    %s221 = scalar_lea.vmem [#allocation0], 6
    %v222 = vld [vmem:[%s221] ss:$0 sm:$0xff]
    %v223 = vmul.f32 %v220, %v220
    %224 = vadd.xlane.f32.xlu0 %v223
    %v225 = vpop.xlane.xlu0 %224
    %v226 = vsub.f32 %v222, %v225
    %v227 = vrsqrt.pop %v226
    %v228 = vmul.f32 %v227, %v226
    %v229 = vmul.f32 %v228, %v227
    %v230 = vmul.f32 0.5, %v229
    %v231 = vsub.f32 1.5, %v230
    %v232 = vmul.f32 %v227, %v231
    %vm233 = vweird.f32 %v226
    %vm234 = vweird.f32 %v227
    %vm235 = vmor %vm233, %vm234
    %v236 = vsel %vm235, %v227, %v232
    %v237 = vld [vmem:[#allocation0] sm:$0xff]
    %v238 = vld [vmem:[#allocation1] sm:$0xff]
    %v239 = vmul.f32 %v238, %v220
    %240 = vadd.xlane.f32.xlu0 %v239
    %v241 = vpop.xlane.xlu0 %240
    %v242 = vsub.f32 %v237, %v241
    %v243 = vmul.f32 %v242, %v236
    %vm244 = vcmask 1047558
    %vm245 = vmand %vm218, %vm244
    %v246 = vsel %vm245, %v243, 0.0
    %v247 = vadd.f32 %v238, %v246
    %248 = vst [vmem:[#allocation1] sm:$0xff] %v247
    %vm249 = vcmask 64568
    %s250 = scalar_lea.vmem [#allocation1], 7
    %v251 = vld [vmem:[%s250] ss:$0 sm:$0xff]
    %s252 = scalar_lea.vmem [#allocation0], 7
    %v253 = vld [vmem:[%s252] ss:$0 sm:$0xff]
    %v254 = vmul.f32 %v251, %v251
    %255 = vadd.xlane.f32.xlu0 %v254
    %v256 = vpop.xlane.xlu0 %255
    %v257 = vsub.f32 %v253, %v256
    %v258 = vrsqrt.pop %v257
    %v259 = vmul.f32 %v258, %v257
    %v260 = vmul.f32 %v259, %v258
    %v261 = vmul.f32 0.5, %v260
    %v262 = vsub.f32 1.5, %v261
    %v263 = vmul.f32 %v258, %v262
    %vm264 = vweird.f32 %v257
    %vm265 = vweird.f32 %v258
    %vm266 = vmor %vm264, %vm265
    %v267 = vsel %vm266, %v258, %v263
    %v268 = vld [vmem:[#allocation0] sm:$0xff]
    %v269 = vld [vmem:[#allocation1] sm:$0xff]
    %v270 = vmul.f32 %v269, %v251
    %271 = vadd.xlane.f32.xlu0 %v270
    %v272 = vpop.xlane.xlu0 %271
    %v273 = vsub.f32 %v268, %v272
    %v274 = vmul.f32 %v273, %v267
    %vm275 = vcmask 1047559
    %vm276 = vmand %vm249, %vm275
    %v277 = vsel %vm276, %v274, 0.0
    %v278 = vadd.f32 %v269, %v277
    %279 = vst [vmem:[#allocation1] sm:$0xff] %v278
    // Predicated region
    $region36: #{custom-call.6} parent=1 // pred_check
      _
    $region37: #{custom-call.6} parent=1 // pred_check_branch
      %281 = sbr.rel (0) target = $region39
    $region38: #{custom-call.6} parent=1 // pred_region
      // Predicated region
      $region40: #{custom-call.6} parent=38 // pred_check
        _
      $region41: #{custom-call.6} parent=38 // pred_check_branch
        %283 = sbr.rel (0) target = $region43
      $region42: #{custom-call.6} parent=38 // pred_region
        // Predicated region
        $region55: #{custom-call.6} parent=42 // pred_check
          _
        $region56: #{custom-call.6} parent=42 // pred_check_branch
          %299 = sbr.rel (0) target = $region58
        $region57: #{custom-call.6} parent=42 // pred_region
          loop: start=0, step=1, limit=1
          $region59: #{custom-call.6} parent=57 // loop_pre_header
            _
          $region60: #{custom-call.6} parent=57 // loop_header
            %s301 = sphi 0, %s305
            %p302 = scmp.ge.s32.totalorder %s301, 1
            %s306 = sphi [#allocation1], [#allocation1]
            %s307 = sphi %s1, %s1
          $region61: #{custom-call.6} parent=57 // loop_header_branch
            %304 = sbr.rel (%p302) target = $region65
          $region62: #{custom-call.6} parent=57 // loop_body
            %v308 = vld [vmem:[%s306] sm:$0xff]
            %309 = vst [vmem:[%s307] sm:$0xff] %v308
          $region63: #{custom-call.6} parent=57 // loop_footer
            %s305 = sadd.s32 1, %s301
          $region64: #{custom-call.6} parent=57 // loop_footer_branch
            %300 = sbr.rel target = $region60
          $region65: #{custom-call.6} parent=57 // loop_exit
            _
        $region58: #{custom-call.6} parent=42 // pred_fallthru
          _
        // Predicated region
        $region66: #{custom-call.6} parent=42 // pred_check
          _
        $region67: #{custom-call.6} parent=42 // pred_check_branch
          %311 = sbr.rel target = $region69
        $region68: #{custom-call.6} parent=42 // pred_region
          _
        $region69: #{custom-call.6} parent=42 // pred_fallthru
          _
      $region43: #{custom-call.6} parent=38 // pred_fallthru
        _
      // Predicated region
      $region44: #{custom-call.6} parent=38 // pred_check
        _
      $region45: #{custom-call.6} parent=38 // pred_check_branch
        %285 = sbr.rel target = $region47
      $region46: #{custom-call.6} parent=38 // pred_region
        %s287 = ssub.s32 256, 1
        loop: start=0, step=1, limit=1
        $region48: #{custom-call.6} parent=46 // loop_pre_header
          _
        $region49: #{custom-call.6} parent=46 // loop_header
          %s289 = sphi 0, %s293
          %p290 = scmp.ge.s32.totalorder %s289, 1
          %s294 = sphi [#allocation1], [#allocation1]
          %s295 = sphi %s1, %s1
        $region50: #{custom-call.6} parent=46 // loop_header_branch
          %292 = sbr.rel (%p290) target = $region54
        $region51: #{custom-call.6} parent=46 // loop_body
          %v296 = vld [vmem:[%s294] sm:%s287]
          %297 = vst [vmem:[%s295] sm:%s287] %v296
        $region52: #{custom-call.6} parent=46 // loop_footer
          %s293 = sadd.s32 1, %s289
        $region53: #{custom-call.6} parent=46 // loop_footer_branch
          %288 = sbr.rel target = $region49
        $region54: #{custom-call.6} parent=46 // loop_exit
          _
      $region47: #{custom-call.6} parent=38 // pred_fallthru
        _
    $region39: #{custom-call.6} parent=1 // pred_fallthru
      _
    %312 = vnop

// kernel: custom-call.7
$region0: #{custom-call.7}
  %s0 = inlined_call_operand.vmem [shape: f32[1,8,8], index: 0, kind: input, shape index: {}]
  %s1 = inlined_call_operand.vmem [shape: f32[1,8,8], index: 1, kind: output, shape index: {}]
  $region1: #{custom-call.7} parent=0
    #allocation0 [shape = 'u8[4096]{0}', space=vmem, size = 0x1000, scoped, tag = 'operand span for operand 0']
    #allocation1 [shape = 'u8[4096]{0}', space=vmem, size = 0x1000, scoped, tag = 'operand span for operand 1']
    #allocation2 [shape = 'f32[8,8]{1,0}', space=vmem, size = 0x1000, scoped, tag = 'rescaled input a']
    // Predicated region
    $region2: #{custom-call.7} parent=1 // pred_check
      _
    $region3: #{custom-call.7} parent=1 // pred_check_branch
      %3 = sbr.rel (0) target = $region5
    $region4: #{custom-call.7} parent=1 // pred_region
      // Predicated region
      $region6: #{custom-call.7} parent=4 // pred_check
        _
      $region7: #{custom-call.7} parent=4 // pred_check_branch
        %5 = sbr.rel (0) target = $region9
      $region8: #{custom-call.7} parent=4 // pred_region
        // Predicated region
        $region21: #{custom-call.7} parent=8 // pred_check
          _
        $region22: #{custom-call.7} parent=8 // pred_check_branch
          %21 = sbr.rel (0) target = $region24
        $region23: #{custom-call.7} parent=8 // pred_region
          loop: start=0, step=1, limit=1
          $region25: #{custom-call.7} parent=23 // loop_pre_header
            _
          $region26: #{custom-call.7} parent=23 // loop_header
            %s23 = sphi 0, %s27
            %p24 = scmp.ge.s32.totalorder %s23, 1
            %s28 = sphi %s0, %s0
            %s29 = sphi [#allocation0], [#allocation0]
          $region27: #{custom-call.7} parent=23 // loop_header_branch
            %26 = sbr.rel (%p24) target = $region31
          $region28: #{custom-call.7} parent=23 // loop_body
            %v30 = vld [vmem:[%s28] sm:$0xff]
            %31 = vst [vmem:[%s29] sm:$0xff] %v30
          $region29: #{custom-call.7} parent=23 // loop_footer
            %s27 = sadd.s32 1, %s23
          $region30: #{custom-call.7} parent=23 // loop_footer_branch
            %22 = sbr.rel target = $region26
          $region31: #{custom-call.7} parent=23 // loop_exit
            _
        $region24: #{custom-call.7} parent=8 // pred_fallthru
          _
        // Predicated region
        $region32: #{custom-call.7} parent=8 // pred_check
          _
        $region33: #{custom-call.7} parent=8 // pred_check_branch
          %33 = sbr.rel target = $region35
        $region34: #{custom-call.7} parent=8 // pred_region
          _
        $region35: #{custom-call.7} parent=8 // pred_fallthru
          _
      $region9: #{custom-call.7} parent=4 // pred_fallthru
        _
      // Predicated region
      $region10: #{custom-call.7} parent=4 // pred_check
        _
      $region11: #{custom-call.7} parent=4 // pred_check_branch
        %7 = sbr.rel target = $region13
      $region12: #{custom-call.7} parent=4 // pred_region
        %s9 = ssub.s32 256, 1
        loop: start=0, step=1, limit=1
        $region14: #{custom-call.7} parent=12 // loop_pre_header
          _
        $region15: #{custom-call.7} parent=12 // loop_header
          %s11 = sphi 0, %s15
          %p12 = scmp.ge.s32.totalorder %s11, 1
          %s16 = sphi %s0, %s0
          %s17 = sphi [#allocation0], [#allocation0]
        $region16: #{custom-call.7} parent=12 // loop_header_branch
          %14 = sbr.rel (%p12) target = $region20
        $region17: #{custom-call.7} parent=12 // loop_body
          %v18 = vld [vmem:[%s16] sm:%s9]
          %19 = vst [vmem:[%s17] sm:%s9] %v18
        $region18: #{custom-call.7} parent=12 // loop_footer
          %s15 = sadd.s32 1, %s11
        $region19: #{custom-call.7} parent=12 // loop_footer_branch
          %10 = sbr.rel target = $region15
        $region20: #{custom-call.7} parent=12 // loop_exit
          _
      $region13: #{custom-call.7} parent=4 // pred_fallthru
        _
    $region5: #{custom-call.7} parent=1 // pred_fallthru
      _
    %34 = vnop
    %v35 = vlaneseq
    %v36 = vand.u32 %v35, 127
    %vm37 = vcmp.lt.s32.totalorder %v36, 8
    %v38 = vlaneseq
    %v39 = vshrl.u32 %v38, 7
    %vm41 = vcmp.eq.s32.totalorder %v39, %v36
    %v42 = vld [vmem:[#allocation0] sm:$0xff]
    %v43 = vsel %vm41, %v42, 0.0
    %44 = vadd.xlane.f32.xlu0 %v43
    %v45 = vpop.xlane.xlu0 %44
    %vm46 = vcmp.ge.s32.totalorder %v39, %v36
    %vm47 = vmand %vm46, %vm37
    %v48 = vsel %vm47, %v42, 0.0
    %v49 = vrcp.pop %v45
    %v50 = vmul.f32 %v45, %v49
    %v51 = vsub.f32 1.0, %v50
    %v52 = vmul.f32 %v49, %v51
    %v53 = vadd.f32 %v49, %v52
    %vm54 = vweird.f32 %v45
    %vm55 = vweird.f32 %v49
    %vm56 = vmor %vm54, %vm55
    %v57 = vsel %vm56, %v49, %v53
    %v58 = vand.u32 2147483647, %v45
    %vm59 = vcmp.eq.f32.partialorder %v58, 8.507059e+37
    %v60 = vand.u32 %v45, 2147483648
    %v61 = vor.u32 1.1754944e-38, %v60
    %v62 = vsel %vm59, %v61, %v57
    %v63 = vmul.f32 %v48, %v62
    %64 = vst [vmem:[#allocation2] sm:$0xff] %v63
    %v65 = vlaneseq
    %v66 = vand.u32 %v65, 127
    %v67 = vlaneseq
    %v68 = vshrl.u32 %v67, 7
    %vm70 = vcmp.eq.s32.totalorder %v66, %v68
    %v71 = vlaneseq
    %v72 = vand.u32 %v71, 127
    %vm73 = vcmp.eq.s32.totalorder %v72, 0
    %v74 = vsel %vm73, 1.0, -1.0
    %v75 = vsel %vm70, %v74, 0.0
    %s76 = scalar_lea.vmem [#allocation2], 1
    %v77 = vld [vmem:[%s76] ss:$0 sm:$0xff]
    %v78 = vxor.u32 %v77, 2147483648
    %v79 = vlaneseq
    %v80 = vand.u32 %v79, 127
    %vm81 = vcmp.eq.s32.totalorder %v80, 1
    %v82 = vmul.f32 %v78, %v75
    %83 = vadd.xlane.f32.xlu0 %v82
    %v84 = vpop.xlane.xlu0 %83
    %v85 = vsel %vm81, %v84, %v75
    %s86 = scalar_lea.vmem [#allocation2], 2
    %v87 = vld [vmem:[%s86] ss:$0 sm:$0xff]
    %v88 = vxor.u32 %v87, 2147483648
    %v89 = vlaneseq
    %v90 = vand.u32 %v89, 127
    %vm91 = vcmp.eq.s32.totalorder %v90, 2
    %v92 = vmul.f32 %v88, %v85
    %93 = vadd.xlane.f32.xlu0 %v92
    %v94 = vpop.xlane.xlu0 %93
    %v95 = vsel %vm91, %v94, %v85
    %s96 = scalar_lea.vmem [#allocation2], 3
    %v97 = vld [vmem:[%s96] ss:$0 sm:$0xff]
    %v98 = vxor.u32 %v97, 2147483648
    %v99 = vlaneseq
    %v100 = vand.u32 %v99, 127
    %vm101 = vcmp.eq.s32.totalorder %v100, 3
    %v102 = vmul.f32 %v98, %v95
    %103 = vadd.xlane.f32.xlu0 %v102
    %v104 = vpop.xlane.xlu0 %103
    %v105 = vsel %vm101, %v104, %v95
    %s106 = scalar_lea.vmem [#allocation2], 4
    %v107 = vld [vmem:[%s106] ss:$0 sm:$0xff]
    %v108 = vxor.u32 %v107, 2147483648
    %v109 = vlaneseq
    %v110 = vand.u32 %v109, 127
    %vm111 = vcmp.eq.s32.totalorder %v110, 4
    %v112 = vmul.f32 %v108, %v105
    %113 = vadd.xlane.f32.xlu0 %v112
    %v114 = vpop.xlane.xlu0 %113
    %v115 = vsel %vm111, %v114, %v105
    %s116 = scalar_lea.vmem [#allocation2], 5
    %v117 = vld [vmem:[%s116] ss:$0 sm:$0xff]
    %v118 = vxor.u32 %v117, 2147483648
    %v119 = vlaneseq
    %v120 = vand.u32 %v119, 127
    %vm121 = vcmp.eq.s32.totalorder %v120, 5
    %v122 = vmul.f32 %v118, %v115
    %123 = vadd.xlane.f32.xlu0 %v122
    %v124 = vpop.xlane.xlu0 %123
    %v125 = vsel %vm121, %v124, %v115
    %s126 = scalar_lea.vmem [#allocation2], 6
    %v127 = vld [vmem:[%s126] ss:$0 sm:$0xff]
    %v128 = vxor.u32 %v127, 2147483648
    %v129 = vlaneseq
    %v130 = vand.u32 %v129, 127
    %vm131 = vcmp.eq.s32.totalorder %v130, 6
    %v132 = vmul.f32 %v128, %v125
    %133 = vadd.xlane.f32.xlu0 %v132
    %v134 = vpop.xlane.xlu0 %133
    %v135 = vsel %vm131, %v134, %v125
    %s136 = scalar_lea.vmem [#allocation2], 7
    %v137 = vld [vmem:[%s136] ss:$0 sm:$0xff]
    %v138 = vxor.u32 %v137, 2147483648
    %v139 = vlaneseq
    %v140 = vand.u32 %v139, 127
    %vm141 = vcmp.eq.s32.totalorder %v140, 7
    %v142 = vmul.f32 %v138, %v135
    %143 = vadd.xlane.f32.xlu0 %v142
    %v144 = vpop.xlane.xlu0 %143
    %v145 = vsel %vm141, %v144, %v135
    %v146 = vrcp.pop %v45
    %v147 = vmul.f32 %v45, %v146
    %v148 = vsub.f32 1.0, %v147
    %v149 = vmul.f32 %v146, %v148
    %v150 = vadd.f32 %v146, %v149
    %vm151 = vweird.f32 %v45
    %vm152 = vweird.f32 %v146
    %vm153 = vmor %vm151, %vm152
    %v154 = vsel %vm153, %v146, %v150
    %v155 = vand.u32 2147483647, %v45
    %vm156 = vcmp.eq.f32.partialorder %v155, 8.507059e+37
    %v157 = vand.u32 %v45, 2147483648
    %v158 = vor.u32 1.1754944e-38, %v157
    %v159 = vsel %vm156, %v158, %v154
    %v160 = vmul.f32 %v145, %v159
    %vm161 = vweird.f32 %v45
    %v162 = vsel %vm161, %v145, %v160
    %163 = vst [vmem:[#allocation1] sm:$0xff] %v162
    // Predicated region
    $region36: #{custom-call.7} parent=1 // pred_check
      _
    $region37: #{custom-call.7} parent=1 // pred_check_branch
      %165 = sbr.rel (0) target = $region39
    $region38: #{custom-call.7} parent=1 // pred_region
      // Predicated region
      $region40: #{custom-call.7} parent=38 // pred_check
        _
      $region41: #{custom-call.7} parent=38 // pred_check_branch
        %167 = sbr.rel (0) target = $region43
      $region42: #{custom-call.7} parent=38 // pred_region
        // Predicated region
        $region55: #{custom-call.7} parent=42 // pred_check
          _
        $region56: #{custom-call.7} parent=42 // pred_check_branch
          %183 = sbr.rel (0) target = $region58
        $region57: #{custom-call.7} parent=42 // pred_region
          loop: start=0, step=1, limit=1
          $region59: #{custom-call.7} parent=57 // loop_pre_header
            _
          $region60: #{custom-call.7} parent=57 // loop_header
            %s185 = sphi 0, %s189
            %p186 = scmp.ge.s32.totalorder %s185, 1
            %s190 = sphi [#allocation1], [#allocation1]
            %s191 = sphi %s1, %s1
          $region61: #{custom-call.7} parent=57 // loop_header_branch
            %188 = sbr.rel (%p186) target = $region65
          $region62: #{custom-call.7} parent=57 // loop_body
            %v192 = vld [vmem:[%s190] sm:$0xff]
            %193 = vst [vmem:[%s191] sm:$0xff] %v192
          $region63: #{custom-call.7} parent=57 // loop_footer
            %s189 = sadd.s32 1, %s185
          $region64: #{custom-call.7} parent=57 // loop_footer_branch
            %184 = sbr.rel target = $region60
          $region65: #{custom-call.7} parent=57 // loop_exit
            _
        $region58: #{custom-call.7} parent=42 // pred_fallthru
          _
        // Predicated region
        $region66: #{custom-call.7} parent=42 // pred_check
          _
        $region67: #{custom-call.7} parent=42 // pred_check_branch
          %195 = sbr.rel target = $region69
        $region68: #{custom-call.7} parent=42 // pred_region
          _
        $region69: #{custom-call.7} parent=42 // pred_fallthru
          _
      $region43: #{custom-call.7} parent=38 // pred_fallthru
        _
      // Predicated region
      $region44: #{custom-call.7} parent=38 // pred_check
        _
      $region45: #{custom-call.7} parent=38 // pred_check_branch
        %169 = sbr.rel target = $region47
      $region46: #{custom-call.7} parent=38 // pred_region
        %s171 = ssub.s32 256, 1
        loop: start=0, step=1, limit=1
        $region48: #{custom-call.7} parent=46 // loop_pre_header
          _
        $region49: #{custom-call.7} parent=46 // loop_header
          %s173 = sphi 0, %s177
          %p174 = scmp.ge.s32.totalorder %s173, 1
          %s178 = sphi [#allocation1], [#allocation1]
          %s179 = sphi %s1, %s1
        $region50: #{custom-call.7} parent=46 // loop_header_branch
          %176 = sbr.rel (%p174) target = $region54
        $region51: #{custom-call.7} parent=46 // loop_body
          %v180 = vld [vmem:[%s178] sm:%s171]
          %181 = vst [vmem:[%s179] sm:%s171] %v180
        $region52: #{custom-call.7} parent=46 // loop_footer
          %s177 = sadd.s32 1, %s173
        $region53: #{custom-call.7} parent=46 // loop_footer_branch
          %172 = sbr.rel target = $region49
        $region54: #{custom-call.7} parent=46 // loop_exit
          _
      $region47: #{custom-call.7} parent=38 // pred_fallthru
        _
    $region39: #{custom-call.7} parent=1 // pred_fallthru
      _
    %196 = vnop

// kernel: utility_function_forward.2
$region0: #{utility_function_forward.2}
  #allocation0 [shape = 'u32[]', space=smem, size = 0x4, offset = 0x4, fixed_abs, tag = 'smem constant byte address 0x4 - core index']
  #allocation1 [shape = 'u32[72,128]{1,0:T(1,128)}', space=vmem, size = 0x9000, scoped, tag = 'internal scratch']
  %s0 = inlined_call_operand.vmem [shape: f32[11,4], index: 0, kind: input, shape index: {}]
  %s1 = inlined_call_operand.vmem [shape: f32[11,11], index: 1, kind: output, shape index: {}]
  %s2 = sld [smem:[#allocation0]]
  $region14: #{utility_function_forward.2} parent=0
    _
  %s4 = ssub.s32 1, %s2
  %s5 = scalar_select 0, %s4, %s2
  // Predicated region
  $region2: #{utility_function_forward.2} parent=0 // pred_check
    _
  $region3: #{utility_function_forward.2} parent=0 // pred_check_branch
    %7 = sbr.rel (0) target = $region5
  $region4: #{utility_function_forward.2} parent=0 // pred_region
    _
  $region5: #{utility_function_forward.2} parent=0 // pred_fallthru
    _
  %v8 = vld [vmem:[%s0] sm:$0xff]
  %v9 = vld [vmem:[%s0 + $0x8] sm:$0x7]
  %v10 = vmul.f32 %v8, %v8
  %v11 = vmul.f32 %v9, %v9
  %vm12 = vcmask 31744
  %v13 = vsel %vm12, %v10, 0.0
  %14 = vadd.xlane.f32.xlu0 %v13
  %v15 = vpop.xlane.xlu0 %14
  %vm16 = vcmask 26624
  %v17 = vsel %vm16, %v11, 0.0
  %18 = vadd.xlane.f32.xlu0 %v17
  %v19 = vpop.xlane.xlu0 %18
  %v21 = vsel %vm12, 1.0, 0
  %v24 = vsel %vm12, %v10, 0
  %v27 = vsel %vm12, %v11, 0
  %29 = vmatpush.xpose.msra.mxu0 0.0
  %30 = vmatpush.xpose.msra.mxu0 0.0
  %31 = vmatpush.xpose.msra.mxu0 0.0
  %32 = vmatpush.xpose.msra.mxu0 0.0
  %33 = vmatpush.xpose.msra.mxu0 0.0
  %34 = vmatpush.xpose.msra.mxu0 0.0
  %35 = vmatpush.xpose.msra.mxu0 0.0
  %36 = vmatpush.xpose.msra.mxu0 0.0
  %37 = vmatpush.xpose.msra.mxu0 0.0
  %38 = vmatpush.xpose.msra.mxu0 0.0
  %39 = vmatpush.xpose.msra.mxu0 0.0
  %40 = vmatpush.xpose.msra.mxu0 0.0
  %41 = vmatpush.xpose.msra.mxu0 0.0
  %42 = vmatpush.xpose.msra.mxu0 0.0
  %43 = vmatpush.xpose.msra.mxu0 %v27
  %44 = vmatpush.xpose.msra.mxu0 %v24
  %45 = vmatmul.f32.gmra.mxu0 %v21
  %v46 = vpop.f32.mrf.mxu0
  %v47 = vadd.f32 0.0, %v46
  %48 = vdwg.mxu0
  %v50 = vsel %vm12, %v8, 0
  %v53 = vsel %vm12, %v9, 0
  %55 = vmatpush.xpose.msra.mxu0 0.0
  %56 = vmatpush.xpose.msra.mxu0 0.0
  %57 = vmatpush.xpose.msra.mxu0 0.0
  %58 = vmatpush.xpose.msra.mxu0 0.0
  %59 = vmatpush.xpose.msra.mxu0 0.0
  %60 = vmatpush.xpose.msra.mxu0 0.0
  %61 = vmatpush.xpose.msra.mxu0 0.0
  %62 = vmatpush.xpose.msra.mxu0 0.0
  %63 = vmatpush.xpose.msra.mxu0 0.0
  %64 = vmatpush.xpose.msra.mxu0 0.0
  %65 = vmatpush.xpose.msra.mxu0 0.0
  %66 = vmatpush.xpose.msra.mxu0 0.0
  %67 = vmatpush.xpose.msra.mxu0 0.0
  %68 = vmatpush.xpose.msra.mxu0 0.0
  %69 = vmatpush.xpose.msra.mxu0 %v53
  %70 = vmatpush.xpose.msra.mxu0 %v50
  %71 = vmatmul.f32.gmra.mxu0 %v50
  %v72 = vpop.f32.mrf.mxu0
  %v73 = vadd.f32 0.0, %v72
  %74 = vmatmul.f32.gmra.mxu0 %v53
  %v75 = vpop.f32.mrf.mxu0
  %v76 = vadd.f32 0.0, %v75
  %77 = vdwg.mxu0
  %v78 = vperm.slane %v47, 0
  %v79 = vadd.f32 %v15, %v78
  %v80 = vadd.f32 %v19, %v78
  %v81 = vmul.f32 %v73, 2.0
  %v82 = vmul.f32 %v76, 2.0
  %v83 = vsub.f32 %v79, %v81
  %v84 = vsub.f32 %v80, %v82
  %v85 = vmax.f32 %v83, 0.0
  %v86 = vmax.f32 %v84, 0.0
  %v87 = vmul.f32 %v85, -0.5
  %v88 = vmul.f32 %v86, -0.5
  %v89 = vmul.f32 %v87, 1.442695
  %v90 = vpow.pop %v89
  %v91 = vmul.f32 %v88, 1.442695
  %v92 = vpow.pop %v91
  %v93 = vlaneseq
  %v94 = vshrl.u32 %v93, 7
  %v95 = vadd.s32 %v94, 8
  %v96 = vlaneseq
  %v97 = vand.u32 %v96, 127
  %vm98 = vcmp.eq.s32.totalorder %v94, %v97
  %vm99 = vcmp.eq.s32.totalorder %v95, %v97
  %v100 = vsel %vm98, 0.1, 0.0
  %v101 = vsel %vm99, 0.1, 0.0
  %v102 = vadd.f32 %v90, %v100
  %v103 = vadd.f32 %v92, %v101
  %vm104 = vcmask 89088
  %105 = vst.msk [vmem:[%s1] sm:$0xff] %vm104, %v102
  %vm106 = vcmask 83968
  %107 = vst.msk [vmem:[%s1 + $0x8] sm:$0x7] %vm106, %v103
  // Predicated region
  $region6: #{utility_function_forward.2} parent=0 // pred_check
    _
  $region7: #{utility_function_forward.2} parent=0 // pred_check_branch
    %109 = sbr.rel (0) target = $region9
  $region8: #{utility_function_forward.2} parent=0 // pred_region
    _
  $region9: #{utility_function_forward.2} parent=0 // pred_fallthru
    _
  // Predicated region
  $region10: #{utility_function_forward.2} parent=0 // pred_check
    _
  $region11: #{utility_function_forward.2} parent=0 // pred_check_branch
    %111 = sbr.rel (0) target = $region13
  $region12: #{utility_function_forward.2} parent=0 // pred_region
    _
  $region13: #{utility_function_forward.2} parent=0 // pred_fallthru
    _

// kernel: utility_function_forward.3
$region0: #{utility_function_forward.3}
  #allocation0 [shape = 'u32[]', space=smem, size = 0x4, offset = 0x4, fixed_abs, tag = 'smem constant byte address 0x4 - core index']
  #allocation1 [shape = 'u32[72,128]{1,0:T(1,128)}', space=vmem, size = 0x9000, scoped, tag = 'internal scratch']
  #allocation2 [shape = 'f32[1,1]{1,0:T(1,128)S(1)}', space=vmem, size = 0x200, scoped, tag = 'scoped memory for utility_function_forward.3']
  %s0 = inlined_call_operand.vmem [shape: f32[11,4], index: 0, kind: input, shape index: {}]
  %s1 = inlined_call_operand.vmem [shape: f32[11,1], index: 1, kind: input, shape index: {}]
  %s2 = inlined_call_operand.vmem [shape: f32[6,4], index: 2, kind: input, shape index: {}]
  %s3 = inlined_call_operand.vmem [shape: f32[6,1], index: 3, kind: input, shape index: {}]
  %s4 = inlined_call_operand.vmem [shape: f32[4,8], index: 4, kind: input, shape index: {}]
  %s5 = inlined_call_operand.vmem [shape: f32[1,8], index: 5, kind: input, shape index: {}]
  %s6 = inlined_call_operand.vmem [shape: f32[1,8], index: 6, kind: input, shape index: {}]
  %s7 = inlined_call_operand.<no memory space> [shape: f32[1,1], index: 7, kind: input, shape index: {}]
  %s8 = inlined_call_operand.hbm [shape: f32[1,1], index: 8, kind: output, shape index: {}]
  %s9 = sld [smem:[#allocation0]]
  $region42: #{utility_function_forward.3} parent=0
    _
  %s11 = ssub.s32 1, %s9
  %s12 = scalar_select 0, %s11, %s9
  %v13 = vstv %s7
  %14 = vst [vmem:[#allocation2] sm:$0x1] %v13
  $region1: #{utility_function_forward.3} parent=0
    #allocation3 [shape = 'u8[512]{0}', space=vmem, size = 0x400, scoped, tag = 'output window, operand 0, single buffered']
    #allocation4 [shape = 's32[1]{0}', space=sflag, size = 0x4, scoped, tag = 'scoped memory for utility_function_forward.3']
    %15 = vsyncpa [#allocation4], 0
    // Predicated region
    $region2: #{utility_function_forward.3} parent=1 // pred_check
      _
    $region3: #{utility_function_forward.3} parent=1 // pred_check_branch
      %17 = sbr.rel (0) target = $region5
    $region4: #{utility_function_forward.3} parent=1 // pred_region
      _
    $region5: #{utility_function_forward.3} parent=1 // pred_fallthru
      _
    // Predicated region
    $region6: #{utility_function_forward.3} parent=1 // pred_check
      _
    $region7: #{utility_function_forward.3} parent=1 // pred_check_branch
      %19 = sbr.rel (0) target = $region9
    $region8: #{utility_function_forward.3} parent=1 // pred_region
      _
    $region9: #{utility_function_forward.3} parent=1 // pred_fallthru
      _
    // Predicated region
    $region10: #{utility_function_forward.3} parent=1 // pred_check
      _
    $region11: #{utility_function_forward.3} parent=1 // pred_check_branch
      %21 = sbr.rel (0) target = $region13
    $region12: #{utility_function_forward.3} parent=1 // pred_region
      _
    $region13: #{utility_function_forward.3} parent=1 // pred_fallthru
      _
    // Predicated region
    $region14: #{utility_function_forward.3} parent=1 // pred_check
      _
    $region15: #{utility_function_forward.3} parent=1 // pred_check_branch
      %23 = sbr.rel (0) target = $region17
    $region16: #{utility_function_forward.3} parent=1 // pred_region
      _
    $region17: #{utility_function_forward.3} parent=1 // pred_fallthru
      _
    // Predicated region
    $region18: #{utility_function_forward.3} parent=1 // pred_check
      _
    $region19: #{utility_function_forward.3} parent=1 // pred_check_branch
      %25 = sbr.rel (0) target = $region21
    $region20: #{utility_function_forward.3} parent=1 // pred_region
      _
    $region21: #{utility_function_forward.3} parent=1 // pred_fallthru
      _
    // Predicated region
    $region22: #{utility_function_forward.3} parent=1 // pred_check
      _
    $region23: #{utility_function_forward.3} parent=1 // pred_check_branch
      %27 = sbr.rel (0) target = $region25
    $region24: #{utility_function_forward.3} parent=1 // pred_region
      _
    $region25: #{utility_function_forward.3} parent=1 // pred_fallthru
      _
    // Predicated region
    $region26: #{utility_function_forward.3} parent=1 // pred_check
      _
    $region27: #{utility_function_forward.3} parent=1 // pred_check_branch
      %29 = sbr.rel (0) target = $region29
    $region28: #{utility_function_forward.3} parent=1 // pred_region
      _
    $region29: #{utility_function_forward.3} parent=1 // pred_fallthru
      _
    // Predicated region
    $region30: #{utility_function_forward.3} parent=1 // pred_check
      _
    $region31: #{utility_function_forward.3} parent=1 // pred_check_branch
      %31 = sbr.rel (0) target = $region33
    $region32: #{utility_function_forward.3} parent=1 // pred_region
      _
    $region33: #{utility_function_forward.3} parent=1 // pred_fallthru
      _
    %v32 = vld [vmem:[%s0] sm:$0xff]
    %v33 = vld [vmem:[%s0 + $0x8] sm:$0x7]
    %v34 = vld [vmem:[%s1] sm:$0xff]
    %v35 = vld [vmem:[%s1 + $0x8] sm:$0x7]
    %v36 = vld [vmem:[%s2] sm:$0x3f]
    %v37 = vld [vmem:[%s3] sm:$0x3f]
    %v38 = vld [vmem:[%s4] sm:$0xf]
    %v39 = vld [vmem:[%s5] sm:$0x1]
    %v40 = vld [vmem:[%s6] sm:$0x1]
    %v41 = vld [vmem:[#allocation2] sm:$0x1]
    %v43 = vperm.slane %v39, 0
    %vm45 = vcmask 31744
    %v47 = vsel %vm45, %v32, 0
    %v50 = vsel %vm45, %v33, 0
    %vm52 = vcmask 1043456
    %v54 = vsel %vm52, %v38, 0
    %56 = vmatpush.msra.mxu0 0.0
    %57 = vmatpush.msra.mxu0 0.0
    %58 = vmatpush.msra.mxu0 0.0
    %59 = vmatpush.msra.mxu0 0.0
    %60 = vmatpush.msra.mxu0 0.0
    %61 = vmatpush.msra.mxu0 0.0
    %62 = vmatpush.msra.mxu0 0.0
    %63 = vmatpush.msra.mxu0 0.0
    %64 = vmatpush.msra.mxu0 0.0
    %65 = vmatpush.msra.mxu0 0.0
    %66 = vmatpush.msra.mxu0 0.0
    %67 = vmatpush.msra.mxu0 0.0
    %68 = vmatpush.msra.mxu0 0.0
    %69 = vmatpush.msra.mxu0 0.0
    %70 = vmatpush.msra.mxu0 0.0
    %71 = vmatpush.msra.mxu0 %v54
    %72 = vmatmul.f32.gmra.mxu0 %v47
    %v73 = vpop.f32.mrf.mxu0
    %v74 = vadd.f32 %v43, %v73
    %75 = vmatmul.f32.gmra.mxu0 %v50
    %v76 = vpop.f32.mrf.mxu0
    %v77 = vadd.f32 %v43, %v76
    %78 = vdwg.mxu0
    %v79 = vmax.f32 %v74, 0.0
    %v80 = vmax.f32 %v77, 0.0
    %v82 = vperm.slane %v40, 0
    %v84 = vmul.f32 %v79, %v82
    %v85 = vmul.f32 %v80, %v82
    %vm86 = vcmask 64512
    %v87 = vsel %vm86, %v84, 0.0
    %88 = vadd.xlane.f32.xlu0 %v87
    %v89 = vpop.xlane.xlu0 %88
    %vm90 = vcmask 59392
    %v91 = vsel %vm90, %v85, 0.0
    %92 = vadd.xlane.f32.xlu0 %v91
    %v93 = vpop.xlane.xlu0 %92
    %v95 = vperm.slane %v41, 0
    %v97 = vadd.f32 %v89, %v95
    %v98 = vadd.f32 %v93, %v95
    %v99 = vsub.f32 %v97, %v34
    %v100 = vsub.f32 %v98, %v35
    %v101 = vmul.f32 %v99, 0.18181819
    %v102 = vmul.f32 %v100, 0.18181819
    %104 = vset.pattern.permute.xlu0 0
    %105 = vperm.xlu0 %104, %v101
    %v106 = vpop.permute.xlu0 %105
    %109 = vset.pattern.permute.xlu0 0
    %110 = vperm.xlu0 %109, %v102
    %v111 = vpop.permute.xlu0 %110
    %v113 = vmul.f32 %v106, %v79
    %v114 = vmul.f32 %v111, %v80
    %v115 = vsel %vm86, %v113, 0.0
    %v116 = vsel %vm90, %v114, 0.0
    %v117 = vadd.f32 %v115, %v116
    %v118 = vrot.slane %v117, 4
    %v119 = vadd.f32 %v117, %v118
    %v120 = vrot.slane %v119, 2
    %v121 = vadd.f32 %v119, %v120
    %v122 = vrot.slane %v121, 1
    %v123 = vadd.f32 %v121, %v122
    %vm124 = vcmask 7168
    %v125 = vsel %vm124, %v101, 0.0
    %vm126 = vcmask 2048
    %v127 = vsel %vm126, %v102, 0.0
    %v128 = vadd.f32 %v125, %v127
    %v129 = vrot.slane %v128, 4
    %v130 = vadd.f32 %v128, %v129
    %v131 = vrot.slane %v130, 2
    %v132 = vadd.f32 %v130, %v131
    %v133 = vrot.slane %v132, 1
    %v134 = vadd.f32 %v132, %v133
    %v135 = vmul.f32 %v106, %v82
    %v136 = vmul.f32 %v111, %v82
    %vm137 = vcmp.gt.f32.partialorder %v74, 0.0
    %vm138 = vcmp.gt.f32.partialorder %v77, 0.0
    %v139 = vsel %vm137, %v135, 0.0
    %v140 = vsel %vm138, %v136, 0.0
    %141 = vxpose.xlu0.b32.start [1/16] %v32, 128
    %142 = vxpose.xlu0.b32.cont [2/16] %v33, 128
    %143 = vxpose.xlu0.b32.cont [3/16] 0.0, 128
    %144 = vxpose.xlu0.b32.cont [4/16] 0.0, 128
    %145 = vxpose.xlu0.b32.cont [5/16] 0.0, 128
    %146 = vxpose.xlu0.b32.cont [6/16] 0.0, 128
    %147 = vxpose.xlu0.b32.cont [7/16] 0.0, 128
    %148 = vxpose.xlu0.b32.cont [8/16] 0.0, 128
    %149 = vxpose.xlu0.b32.cont [9/16] 0.0, 128
    %150 = vxpose.xlu0.b32.cont [10/16] 0.0, 128
    %151 = vxpose.xlu0.b32.cont [11/16] 0.0, 128
    %152 = vxpose.xlu0.b32.cont [12/16] 0.0, 128
    %153 = vxpose.xlu0.b32.cont [13/16] 0.0, 128
    %154 = vxpose.xlu0.b32.cont [14/16] 0.0, 128
    %155 = vxpose.xlu0.b32.cont [15/16] 0.0, 128
    %156 = vxpose.xlu0.b32.end [16/16] 0.0, 128
    %v157 = vpop.trf.xlu0
    %v158 = vpop.trf.xlu0
    %v159 = vpop.trf.xlu0
    %v160 = vpop.trf.xlu0
    %v161 = vpop.trf.xlu0
    %v162 = vpop.trf.xlu0
    %v163 = vpop.trf.xlu0
    %v164 = vpop.trf.xlu0
    %v165 = vpop.trf.xlu0
    %v166 = vpop.trf.xlu0
    %v167 = vpop.trf.xlu0
    %v168 = vpop.trf.xlu0
    %v169 = vpop.trf.xlu0
    %v170 = vpop.trf.xlu0
    %v171 = vpop.trf.xlu0
    %v172 = vpop.trf.xlu0
    %vm173 = vcmask 89088
    %v175 = vsel %vm173, %v157, 0
    %vm177 = vcmask 1042432
    %v179 = vsel %vm177, %v140, 0
    %181 = vmatpush.msra.mxu0 0.0
    %182 = vmatpush.msra.mxu0 0.0
    %183 = vmatpush.msra.mxu0 0.0
    %184 = vmatpush.msra.mxu0 0.0
    %185 = vmatpush.msra.mxu0 0.0
    %186 = vmatpush.msra.mxu0 0.0
    %187 = vmatpush.msra.mxu0 0.0
    %188 = vmatpush.msra.mxu0 0.0
    %189 = vmatpush.msra.mxu0 0.0
    %190 = vmatpush.msra.mxu0 0.0
    %191 = vmatpush.msra.mxu0 0.0
    %192 = vmatpush.msra.mxu0 0.0
    %193 = vmatpush.msra.mxu0 0.0
    %194 = vmatpush.msra.mxu0 0.0
    %195 = vmatpush.msra.mxu0 %v179
    %196 = vmatpush.msra.mxu0 %v139
    %197 = vmatmul.f32.gmra.mxu0 %v175
    %v198 = vpop.f32.mrf.mxu0
    %v199 = vadd.f32 0.0, %v198
    %200 = vdwg.mxu0
    %v201 = vsel %vm86, %v139, 0.0
    %v202 = vsel %vm90, %v140, 0.0
    %v203 = vadd.f32 %v201, %v202
    %v204 = vrot.slane %v203, 4
    %v205 = vadd.f32 %v203, %v204
    %v206 = vrot.slane %v205, 2
    %v207 = vadd.f32 %v205, %v206
    %v208 = vrot.slane %v207, 1
    %v209 = vadd.f32 %v207, %v208
    %v210 = vmul.f32 %v199, 0.001
    %v211 = vand.u32 2147483647, %v199
    %v212 = vadd.f32 %v211, 1e-08
    %v213 = vrcp.pop %v212
    %v214 = vmul.f32 %v212, %v213
    %v215 = vsub.f32 1.0, %v214
    %v216 = vmul.f32 %v213, %v215
    %v217 = vadd.f32 %v213, %v216
    %vm218 = vweird.f32 %v212
    %vm219 = vweird.f32 %v213
    %vm220 = vmor %vm218, %vm219
    %v221 = vsel %vm220, %v213, %v217
    %v222 = vand.u32 2147483647, %v212
    %vm223 = vcmp.eq.f32.partialorder %v222, 8.507059e+37
    %v224 = vand.u32 %v212, 2147483648
    %v225 = vor.u32 1.1754944e-38, %v224
    %v226 = vsel %vm223, %v225, %v221
    %v227 = vmul.f32 %v210, %v226
    %v228 = vsub.f32 %v38, %v227
    %v229 = vmul.f32 %v209, 0.001
    %v230 = vand.u32 2147483647, %v209
    %v231 = vadd.f32 %v230, 1e-08
    %v232 = vrcp.pop %v231
    %v233 = vmul.f32 %v231, %v232
    %v234 = vsub.f32 1.0, %v233
    %v235 = vmul.f32 %v232, %v234
    %v236 = vadd.f32 %v232, %v235
    %vm237 = vweird.f32 %v231
    %vm238 = vweird.f32 %v232
    %vm239 = vmor %vm237, %vm238
    %v240 = vsel %vm239, %v232, %v236
    %v241 = vand.u32 2147483647, %v231
    %vm242 = vcmp.eq.f32.partialorder %v241, 8.507059e+37
    %v243 = vand.u32 %v231, 2147483648
    %v244 = vor.u32 1.1754944e-38, %v243
    %v245 = vsel %vm242, %v244, %v240
    %v246 = vmul.f32 %v229, %v245
    %v247 = vsub.f32 %v39, %v246
    %v248 = vmul.f32 %v123, 0.001
    %v249 = vand.u32 2147483647, %v123
    %v250 = vadd.f32 %v249, 1e-08
    %v251 = vrcp.pop %v250
    %v252 = vmul.f32 %v250, %v251
    %v253 = vsub.f32 1.0, %v252
    %v254 = vmul.f32 %v251, %v253
    %v255 = vadd.f32 %v251, %v254
    %vm256 = vweird.f32 %v250
    %vm257 = vweird.f32 %v251
    %vm258 = vmor %vm256, %vm257
    %v259 = vsel %vm258, %v251, %v255
    %v260 = vand.u32 2147483647, %v250
    %vm261 = vcmp.eq.f32.partialorder %v260, 8.507059e+37
    %v262 = vand.u32 %v250, 2147483648
    %v263 = vor.u32 1.1754944e-38, %v262
    %v264 = vsel %vm261, %v263, %v259
    %v265 = vmul.f32 %v248, %v264
    %v266 = vsub.f32 %v40, %v265
    %v267 = vmul.f32 %v134, 0.001
    %v268 = vand.u32 2147483647, %v134
    %v269 = vadd.f32 %v268, 1e-08
    %v270 = vrcp.pop %v269
    %v271 = vmul.f32 %v269, %v270
    %v272 = vsub.f32 1.0, %v271
    %v273 = vmul.f32 %v270, %v272
    %v274 = vadd.f32 %v270, %v273
    %vm275 = vweird.f32 %v269
    %vm276 = vweird.f32 %v270
    %vm277 = vmor %vm275, %vm276
    %v278 = vsel %vm277, %v270, %v274
    %v279 = vand.u32 2147483647, %v269
    %vm280 = vcmp.eq.f32.partialorder %v279, 8.507059e+37
    %v281 = vand.u32 %v269, 2147483648
    %v282 = vor.u32 1.1754944e-38, %v281
    %v283 = vsel %vm280, %v282, %v278
    %v284 = vmul.f32 %v267, %v283
    %v285 = vsub.f32 %v41, %v284
    %v287 = vperm.slane %v247, 0
    %v290 = vsel %vm45, %v36, 0
    %v293 = vsel %vm52, %v228, 0
    %295 = vmatpush.msra.mxu0 0.0
    %296 = vmatpush.msra.mxu0 0.0
    %297 = vmatpush.msra.mxu0 0.0
    %298 = vmatpush.msra.mxu0 0.0
    %299 = vmatpush.msra.mxu0 0.0
    %300 = vmatpush.msra.mxu0 0.0
    %301 = vmatpush.msra.mxu0 0.0
    %302 = vmatpush.msra.mxu0 0.0
    %303 = vmatpush.msra.mxu0 0.0
    %304 = vmatpush.msra.mxu0 0.0
    %305 = vmatpush.msra.mxu0 0.0
    %306 = vmatpush.msra.mxu0 0.0
    %307 = vmatpush.msra.mxu0 0.0
    %308 = vmatpush.msra.mxu0 0.0
    %309 = vmatpush.msra.mxu0 0.0
    %310 = vmatpush.msra.mxu0 %v293
    %311 = vmatmul.f32.gmra.mxu0 %v290
    %v312 = vpop.f32.mrf.mxu0
    %v313 = vadd.f32 %v287, %v312
    %314 = vdwg.mxu0
    %v315 = vmax.f32 %v313, 0.0
    %v317 = vperm.slane %v266, 0
    %v319 = vmul.f32 %v315, %v317
    %vm320 = vcmask 62464
    %v321 = vsel %vm320, %v319, 0.0
    %322 = vadd.xlane.f32.xlu0 %v321
    %v323 = vpop.xlane.xlu0 %322
    %v325 = vperm.slane %v285, 0
    %v327 = vadd.f32 %v323, %v325
    %v328 = vsub.f32 %v327, %v37
    %v329 = vmul.f32 %v328, %v328
    %vm330 = vcmask 5120
    %v331 = vsel %vm330, %v329, 0.0
    %v332 = vrot.slane %v331, 4
    %v333 = vadd.f32 %v331, %v332
    %v334 = vrot.slane %v333, 2
    %v335 = vadd.f32 %v333, %v334
    %v336 = vrot.slane %v335, 1
    %v337 = vadd.f32 %v335, %v336
    %v338 = vmul.f32 %v337, 0.16666667
    %v339 = vadd.f32 %v338, 0.0
    %340 = vmatpush.msra.mxu0 0.0
    %341 = vmatpush.msra.mxu0 0.0
    %342 = vmatpush.msra.mxu0 0.0
    %343 = vmatpush.msra.mxu0 0.0
    %344 = vmatpush.msra.mxu0 0.0
    %345 = vmatpush.msra.mxu0 0.0
    %346 = vmatpush.msra.mxu0 0.0
    %347 = vmatpush.msra.mxu0 0.0
    %348 = vmatpush.msra.mxu0 0.0
    %349 = vmatpush.msra.mxu0 0.0
    %350 = vmatpush.msra.mxu0 0.0
    %351 = vmatpush.msra.mxu0 0.0
    %352 = vmatpush.msra.mxu0 0.0
    %353 = vmatpush.msra.mxu0 0.0
    %354 = vmatpush.msra.mxu0 0.0
    %355 = vmatpush.msra.mxu0 %v293
    %356 = vmatmul.f32.gmra.mxu0 %v47
    %v357 = vpop.f32.mrf.mxu0
    %v358 = vadd.f32 %v287, %v357
    %359 = vmatmul.f32.gmra.mxu0 %v50
    %v360 = vpop.f32.mrf.mxu0
    %v361 = vadd.f32 %v287, %v360
    %362 = vdwg.mxu0
    %v363 = vmax.f32 %v358, 0.0
    %v364 = vmax.f32 %v361, 0.0
    %v365 = vmul.f32 %v363, %v317
    %v366 = vmul.f32 %v364, %v317
    %v367 = vsel %vm86, %v365, 0.0
    %368 = vadd.xlane.f32.xlu0 %v367
    %v369 = vpop.xlane.xlu0 %368
    %v370 = vsel %vm90, %v366, 0.0
    %371 = vadd.xlane.f32.xlu0 %v370
    %v372 = vpop.xlane.xlu0 %371
    %v373 = vadd.f32 %v369, %v325
    %v374 = vadd.f32 %v372, %v325
    %v375 = vsub.f32 %v373, %v34
    %v376 = vsub.f32 %v374, %v35
    %v377 = vmul.f32 %v375, 0.18181819
    %v378 = vmul.f32 %v376, 0.18181819
    %380 = vset.pattern.permute.xlu0 0
    %381 = vperm.xlu0 %380, %v377
    %v382 = vpop.permute.xlu0 %381
    %385 = vset.pattern.permute.xlu0 0
    %386 = vperm.xlu0 %385, %v378
    %v387 = vpop.permute.xlu0 %386
    %v389 = vmul.f32 %v382, %v363
    %v390 = vmul.f32 %v387, %v364
    %v391 = vsel %vm86, %v389, 0.0
    %v392 = vsel %vm90, %v390, 0.0
    %v393 = vadd.f32 %v391, %v392
    %v394 = vrot.slane %v393, 4
    %v395 = vadd.f32 %v393, %v394
    %v396 = vrot.slane %v395, 2
    %v397 = vadd.f32 %v395, %v396
    %v398 = vrot.slane %v397, 1
    %v399 = vadd.f32 %v397, %v398
    %v400 = vsel %vm124, %v377, 0.0
    %v401 = vsel %vm126, %v378, 0.0
    %v402 = vadd.f32 %v400, %v401
    %v403 = vrot.slane %v402, 4
    %v404 = vadd.f32 %v402, %v403
    %v405 = vrot.slane %v404, 2
    %v406 = vadd.f32 %v404, %v405
    %v407 = vrot.slane %v406, 1
    %v408 = vadd.f32 %v406, %v407
    %v409 = vmul.f32 %v382, %v317
    %v410 = vmul.f32 %v387, %v317
    %vm411 = vcmp.gt.f32.partialorder %v358, 0.0
    %vm412 = vcmp.gt.f32.partialorder %v361, 0.0
    %v413 = vsel %vm411, %v409, 0.0
    %v414 = vsel %vm412, %v410, 0.0
    %v416 = vsel %vm177, %v414, 0
    %418 = vmatpush.msra.mxu0 0.0
    %419 = vmatpush.msra.mxu0 0.0
    %420 = vmatpush.msra.mxu0 0.0
    %421 = vmatpush.msra.mxu0 0.0
    %422 = vmatpush.msra.mxu0 0.0
    %423 = vmatpush.msra.mxu0 0.0
    %424 = vmatpush.msra.mxu0 0.0
    %425 = vmatpush.msra.mxu0 0.0
    %426 = vmatpush.msra.mxu0 0.0
    %427 = vmatpush.msra.mxu0 0.0
    %428 = vmatpush.msra.mxu0 0.0
    %429 = vmatpush.msra.mxu0 0.0
    %430 = vmatpush.msra.mxu0 0.0
    %431 = vmatpush.msra.mxu0 0.0
    %432 = vmatpush.msra.mxu0 %v416
    %433 = vmatpush.msra.mxu0 %v413
    %434 = vmatmul.f32.gmra.mxu0 %v175
    %v435 = vpop.f32.mrf.mxu0
    %v436 = vadd.f32 0.0, %v435
    %437 = vdwg.mxu0
    %v438 = vsel %vm86, %v413, 0.0
    %v439 = vsel %vm90, %v414, 0.0
    %v440 = vadd.f32 %v438, %v439
    %v441 = vrot.slane %v440, 4
    %v442 = vadd.f32 %v440, %v441
    %v443 = vrot.slane %v442, 2
    %v444 = vadd.f32 %v442, %v443
    %v445 = vrot.slane %v444, 1
    %v446 = vadd.f32 %v444, %v445
    %v447 = vmul.f32 %v436, 0.001
    %v448 = vand.u32 2147483647, %v436
    %v449 = vadd.f32 %v448, 1e-08
    %v450 = vrcp.pop %v449
    %v451 = vmul.f32 %v449, %v450
    %v452 = vsub.f32 1.0, %v451
    %v453 = vmul.f32 %v450, %v452
    %v454 = vadd.f32 %v450, %v453
    %vm455 = vweird.f32 %v449
    %vm456 = vweird.f32 %v450
    %vm457 = vmor %vm455, %vm456
    %v458 = vsel %vm457, %v450, %v454
    %v459 = vand.u32 2147483647, %v449
    %vm460 = vcmp.eq.f32.partialorder %v459, 8.507059e+37
    %v461 = vand.u32 %v449, 2147483648
    %v462 = vor.u32 1.1754944e-38, %v461
    %v463 = vsel %vm460, %v462, %v458
    %v464 = vmul.f32 %v447, %v463
    %v465 = vsub.f32 %v228, %v464
    %v466 = vmul.f32 %v446, 0.001
    %v467 = vand.u32 2147483647, %v446
    %v468 = vadd.f32 %v467, 1e-08
    %v469 = vrcp.pop %v468
    %v470 = vmul.f32 %v468, %v469
    %v471 = vsub.f32 1.0, %v470
    %v472 = vmul.f32 %v469, %v471
    %v473 = vadd.f32 %v469, %v472
    %vm474 = vweird.f32 %v468
    %vm475 = vweird.f32 %v469
    %vm476 = vmor %vm474, %vm475
    %v477 = vsel %vm476, %v469, %v473
    %v478 = vand.u32 2147483647, %v468
    %vm479 = vcmp.eq.f32.partialorder %v478, 8.507059e+37
    %v480 = vand.u32 %v468, 2147483648
    %v481 = vor.u32 1.1754944e-38, %v480
    %v482 = vsel %vm479, %v481, %v477
    %v483 = vmul.f32 %v466, %v482
    %v484 = vsub.f32 %v247, %v483
    %v485 = vmul.f32 %v399, 0.001
    %v486 = vand.u32 2147483647, %v399
    %v487 = vadd.f32 %v486, 1e-08
    %v488 = vrcp.pop %v487
    %v489 = vmul.f32 %v487, %v488
    %v490 = vsub.f32 1.0, %v489
    %v491 = vmul.f32 %v488, %v490
    %v492 = vadd.f32 %v488, %v491
    %vm493 = vweird.f32 %v487
    %vm494 = vweird.f32 %v488
    %vm495 = vmor %vm493, %vm494
    %v496 = vsel %vm495, %v488, %v492
    %v497 = vand.u32 2147483647, %v487
    %vm498 = vcmp.eq.f32.partialorder %v497, 8.507059e+37
    %v499 = vand.u32 %v487, 2147483648
    %v500 = vor.u32 1.1754944e-38, %v499
    %v501 = vsel %vm498, %v500, %v496
    %v502 = vmul.f32 %v485, %v501
    %v503 = vsub.f32 %v266, %v502
    %v504 = vmul.f32 %v408, 0.001
    %v505 = vand.u32 2147483647, %v408
    %v506 = vadd.f32 %v505, 1e-08
    %v507 = vrcp.pop %v506
    %v508 = vmul.f32 %v506, %v507
    %v509 = vsub.f32 1.0, %v508
    %v510 = vmul.f32 %v507, %v509
    %v511 = vadd.f32 %v507, %v510
    %vm512 = vweird.f32 %v506
    %vm513 = vweird.f32 %v507
    %vm514 = vmor %vm512, %vm513
    %v515 = vsel %vm514, %v507, %v511
    %v516 = vand.u32 2147483647, %v506
    %vm517 = vcmp.eq.f32.partialorder %v516, 8.507059e+37
    %v518 = vand.u32 %v506, 2147483648
    %v519 = vor.u32 1.1754944e-38, %v518
    %v520 = vsel %vm517, %v519, %v515
    %v521 = vmul.f32 %v504, %v520
    %v522 = vsub.f32 %v285, %v521
    %v524 = vperm.slane %v484, 0
    %v527 = vsel %vm52, %v465, 0
    %529 = vmatpush.msra.mxu0 0.0
    %530 = vmatpush.msra.mxu0 0.0
    %531 = vmatpush.msra.mxu0 0.0
    %532 = vmatpush.msra.mxu0 0.0
    %533 = vmatpush.msra.mxu0 0.0
    %534 = vmatpush.msra.mxu0 0.0
    %535 = vmatpush.msra.mxu0 0.0
    %536 = vmatpush.msra.mxu0 0.0
    %537 = vmatpush.msra.mxu0 0.0
    %538 = vmatpush.msra.mxu0 0.0
    %539 = vmatpush.msra.mxu0 0.0
    %540 = vmatpush.msra.mxu0 0.0
    %541 = vmatpush.msra.mxu0 0.0
    %542 = vmatpush.msra.mxu0 0.0
    %543 = vmatpush.msra.mxu0 0.0
    %544 = vmatpush.msra.mxu0 %v527
    %545 = vmatmul.f32.gmra.mxu0 %v290
    %v546 = vpop.f32.mrf.mxu0
    %v547 = vadd.f32 %v524, %v546
    %548 = vdwg.mxu0
    %v549 = vmax.f32 %v547, 0.0
    %v551 = vperm.slane %v503, 0
    %v553 = vmul.f32 %v549, %v551
    %v554 = vsel %vm320, %v553, 0.0
    %555 = vadd.xlane.f32.xlu0 %v554
    %v556 = vpop.xlane.xlu0 %555
    %v558 = vperm.slane %v522, 0
    %v560 = vadd.f32 %v556, %v558
    %v561 = vsub.f32 %v560, %v37
    %v562 = vmul.f32 %v561, %v561
    %v563 = vsel %vm330, %v562, 0.0
    %v564 = vrot.slane %v563, 4
    %v565 = vadd.f32 %v563, %v564
    %v566 = vrot.slane %v565, 2
    %v567 = vadd.f32 %v565, %v566
    %v568 = vrot.slane %v567, 1
    %v569 = vadd.f32 %v567, %v568
    %v570 = vmul.f32 %v569, 0.16666667
    %v571 = vadd.f32 %v339, %v570
    %572 = vmatpush.msra.mxu0 0.0
    %573 = vmatpush.msra.mxu0 0.0
    %574 = vmatpush.msra.mxu0 0.0
    %575 = vmatpush.msra.mxu0 0.0
    %576 = vmatpush.msra.mxu0 0.0
    %577 = vmatpush.msra.mxu0 0.0
    %578 = vmatpush.msra.mxu0 0.0
    %579 = vmatpush.msra.mxu0 0.0
    %580 = vmatpush.msra.mxu0 0.0
    %581 = vmatpush.msra.mxu0 0.0
    %582 = vmatpush.msra.mxu0 0.0
    %583 = vmatpush.msra.mxu0 0.0
    %584 = vmatpush.msra.mxu0 0.0
    %585 = vmatpush.msra.mxu0 0.0
    %586 = vmatpush.msra.mxu0 0.0
    %587 = vmatpush.msra.mxu0 %v527
    %588 = vmatmul.f32.gmra.mxu0 %v47
    %v589 = vpop.f32.mrf.mxu0
    %v590 = vadd.f32 %v524, %v589
    %591 = vmatmul.f32.gmra.mxu0 %v50
    %v592 = vpop.f32.mrf.mxu0
    %v593 = vadd.f32 %v524, %v592
    %594 = vdwg.mxu0
    %v595 = vmax.f32 %v590, 0.0
    %v596 = vmax.f32 %v593, 0.0
    %v597 = vmul.f32 %v595, %v551
    %v598 = vmul.f32 %v596, %v551
    %v599 = vsel %vm86, %v597, 0.0
    %600 = vadd.xlane.f32.xlu0 %v599
    %v601 = vpop.xlane.xlu0 %600
    %v602 = vsel %vm90, %v598, 0.0
    %603 = vadd.xlane.f32.xlu0 %v602
    %v604 = vpop.xlane.xlu0 %603
    %v605 = vadd.f32 %v601, %v558
    %v606 = vadd.f32 %v604, %v558
    %v607 = vsub.f32 %v605, %v34
    %v608 = vsub.f32 %v606, %v35
    %v609 = vmul.f32 %v607, 0.18181819
    %v610 = vmul.f32 %v608, 0.18181819
    %612 = vset.pattern.permute.xlu0 0
    %613 = vperm.xlu0 %612, %v609
    %v614 = vpop.permute.xlu0 %613
    %617 = vset.pattern.permute.xlu0 0
    %618 = vperm.xlu0 %617, %v610
    %v619 = vpop.permute.xlu0 %618
    %v621 = vmul.f32 %v614, %v595
    %v622 = vmul.f32 %v619, %v596
    %v623 = vsel %vm86, %v621, 0.0
    %v624 = vsel %vm90, %v622, 0.0
    %v625 = vadd.f32 %v623, %v624
    %v626 = vrot.slane %v625, 4
    %v627 = vadd.f32 %v625, %v626
    %v628 = vrot.slane %v627, 2
    %v629 = vadd.f32 %v627, %v628
    %v630 = vrot.slane %v629, 1
    %v631 = vadd.f32 %v629, %v630
    %v632 = vsel %vm124, %v609, 0.0
    %v633 = vsel %vm126, %v610, 0.0
    %v634 = vadd.f32 %v632, %v633
    %v635 = vrot.slane %v634, 4
    %v636 = vadd.f32 %v634, %v635
    %v637 = vrot.slane %v636, 2
    %v638 = vadd.f32 %v636, %v637
    %v639 = vrot.slane %v638, 1
    %v640 = vadd.f32 %v638, %v639
    %v641 = vmul.f32 %v614, %v551
    %v642 = vmul.f32 %v619, %v551
    %vm643 = vcmp.gt.f32.partialorder %v590, 0.0
    %vm644 = vcmp.gt.f32.partialorder %v593, 0.0
    %v645 = vsel %vm643, %v641, 0.0
    %v646 = vsel %vm644, %v642, 0.0
    %v648 = vsel %vm177, %v646, 0
    %650 = vmatpush.msra.mxu0 0.0
    %651 = vmatpush.msra.mxu0 0.0
    %652 = vmatpush.msra.mxu0 0.0
    %653 = vmatpush.msra.mxu0 0.0
    %654 = vmatpush.msra.mxu0 0.0
    %655 = vmatpush.msra.mxu0 0.0
    %656 = vmatpush.msra.mxu0 0.0
    %657 = vmatpush.msra.mxu0 0.0
    %658 = vmatpush.msra.mxu0 0.0
    %659 = vmatpush.msra.mxu0 0.0
    %660 = vmatpush.msra.mxu0 0.0
    %661 = vmatpush.msra.mxu0 0.0
    %662 = vmatpush.msra.mxu0 0.0
    %663 = vmatpush.msra.mxu0 0.0
    %664 = vmatpush.msra.mxu0 %v648
    %665 = vmatpush.msra.mxu0 %v645
    %666 = vmatmul.f32.gmra.mxu0 %v175
    %v667 = vpop.f32.mrf.mxu0
    %v668 = vadd.f32 0.0, %v667
    %669 = vdwg.mxu0
    %v670 = vsel %vm86, %v645, 0.0
    %v671 = vsel %vm90, %v646, 0.0
    %v672 = vadd.f32 %v670, %v671
    %v673 = vrot.slane %v672, 4
    %v674 = vadd.f32 %v672, %v673
    %v675 = vrot.slane %v674, 2
    %v676 = vadd.f32 %v674, %v675
    %v677 = vrot.slane %v676, 1
    %v678 = vadd.f32 %v676, %v677
    %v679 = vmul.f32 %v668, 0.001
    %v680 = vand.u32 2147483647, %v668
    %v681 = vadd.f32 %v680, 1e-08
    %v682 = vrcp.pop %v681
    %v683 = vmul.f32 %v681, %v682
    %v684 = vsub.f32 1.0, %v683
    %v685 = vmul.f32 %v682, %v684
    %v686 = vadd.f32 %v682, %v685
    %vm687 = vweird.f32 %v681
    %vm688 = vweird.f32 %v682
    %vm689 = vmor %vm687, %vm688
    %v690 = vsel %vm689, %v682, %v686
    %v691 = vand.u32 2147483647, %v681
    %vm692 = vcmp.eq.f32.partialorder %v691, 8.507059e+37
    %v693 = vand.u32 %v681, 2147483648
    %v694 = vor.u32 1.1754944e-38, %v693
    %v695 = vsel %vm692, %v694, %v690
    %v696 = vmul.f32 %v679, %v695
    %v697 = vsub.f32 %v465, %v696
    %v698 = vmul.f32 %v678, 0.001
    %v699 = vand.u32 2147483647, %v678
    %v700 = vadd.f32 %v699, 1e-08
    %v701 = vrcp.pop %v700
    %v702 = vmul.f32 %v700, %v701
    %v703 = vsub.f32 1.0, %v702
    %v704 = vmul.f32 %v701, %v703
    %v705 = vadd.f32 %v701, %v704
    %vm706 = vweird.f32 %v700
    %vm707 = vweird.f32 %v701
    %vm708 = vmor %vm706, %vm707
    %v709 = vsel %vm708, %v701, %v705
    %v710 = vand.u32 2147483647, %v700
    %vm711 = vcmp.eq.f32.partialorder %v710, 8.507059e+37
    %v712 = vand.u32 %v700, 2147483648
    %v713 = vor.u32 1.1754944e-38, %v712
    %v714 = vsel %vm711, %v713, %v709
    %v715 = vmul.f32 %v698, %v714
    %v716 = vsub.f32 %v484, %v715
    %v717 = vmul.f32 %v631, 0.001
    %v718 = vand.u32 2147483647, %v631
    %v719 = vadd.f32 %v718, 1e-08
    %v720 = vrcp.pop %v719
    %v721 = vmul.f32 %v719, %v720
    %v722 = vsub.f32 1.0, %v721
    %v723 = vmul.f32 %v720, %v722
    %v724 = vadd.f32 %v720, %v723
    %vm725 = vweird.f32 %v719
    %vm726 = vweird.f32 %v720
    %vm727 = vmor %vm725, %vm726
    %v728 = vsel %vm727, %v720, %v724
    %v729 = vand.u32 2147483647, %v719
    %vm730 = vcmp.eq.f32.partialorder %v729, 8.507059e+37
    %v731 = vand.u32 %v719, 2147483648
    %v732 = vor.u32 1.1754944e-38, %v731
    %v733 = vsel %vm730, %v732, %v728
    %v734 = vmul.f32 %v717, %v733
    %v735 = vsub.f32 %v503, %v734
    %v736 = vmul.f32 %v640, 0.001
    %v737 = vand.u32 2147483647, %v640
    %v738 = vadd.f32 %v737, 1e-08
    %v739 = vrcp.pop %v738
    %v740 = vmul.f32 %v738, %v739
    %v741 = vsub.f32 1.0, %v740
    %v742 = vmul.f32 %v739, %v741
    %v743 = vadd.f32 %v739, %v742
    %vm744 = vweird.f32 %v738
    %vm745 = vweird.f32 %v739
    %vm746 = vmor %vm744, %vm745
    %v747 = vsel %vm746, %v739, %v743
    %v748 = vand.u32 2147483647, %v738
    %vm749 = vcmp.eq.f32.partialorder %v748, 8.507059e+37
    %v750 = vand.u32 %v738, 2147483648
    %v751 = vor.u32 1.1754944e-38, %v750
    %v752 = vsel %vm749, %v751, %v747
    %v753 = vmul.f32 %v736, %v752
    %v754 = vsub.f32 %v522, %v753
    %v756 = vperm.slane %v716, 0
    %v759 = vsel %vm52, %v697, 0
    %761 = vmatpush.msra.mxu0 0.0
    %762 = vmatpush.msra.mxu0 0.0
    %763 = vmatpush.msra.mxu0 0.0
    %764 = vmatpush.msra.mxu0 0.0
    %765 = vmatpush.msra.mxu0 0.0
    %766 = vmatpush.msra.mxu0 0.0
    %767 = vmatpush.msra.mxu0 0.0
    %768 = vmatpush.msra.mxu0 0.0
    %769 = vmatpush.msra.mxu0 0.0
    %770 = vmatpush.msra.mxu0 0.0
    %771 = vmatpush.msra.mxu0 0.0
    %772 = vmatpush.msra.mxu0 0.0
    %773 = vmatpush.msra.mxu0 0.0
    %774 = vmatpush.msra.mxu0 0.0
    %775 = vmatpush.msra.mxu0 0.0
    %776 = vmatpush.msra.mxu0 %v759
    %777 = vmatmul.f32.gmra.mxu0 %v290
    %v778 = vpop.f32.mrf.mxu0
    %v779 = vadd.f32 %v756, %v778
    %780 = vdwg.mxu0
    %v781 = vmax.f32 %v779, 0.0
    %v783 = vperm.slane %v735, 0
    %v785 = vmul.f32 %v781, %v783
    %v786 = vsel %vm320, %v785, 0.0
    %787 = vadd.xlane.f32.xlu0 %v786
    %v788 = vpop.xlane.xlu0 %787
    %v790 = vperm.slane %v754, 0
    %v792 = vadd.f32 %v788, %v790
    %v793 = vsub.f32 %v792, %v37
    %v794 = vmul.f32 %v793, %v793
    %v795 = vsel %vm330, %v794, 0.0
    %v796 = vrot.slane %v795, 4
    %v797 = vadd.f32 %v795, %v796
    %v798 = vrot.slane %v797, 2
    %v799 = vadd.f32 %v797, %v798
    %v800 = vrot.slane %v799, 1
    %v801 = vadd.f32 %v799, %v800
    %v802 = vmul.f32 %v801, 0.16666667
    %v803 = vadd.f32 %v571, %v802
    %v804 = vmul.f32 %v803, 0.33333334
    %vm805 = vcmask 0
    %806 = vst.msk [vmem:[#allocation3] sm:$0x1] %vm805, %v804
    // Predicated region
    $region34: #{utility_function_forward.3} parent=1 // pred_check
      _
    $region35: #{utility_function_forward.3} parent=1 // pred_check_branch
      %808 = sbr.rel (0) target = $region37
    $region36: #{utility_function_forward.3} parent=1 // pred_region
      %810 = vsyncadd [#allocation4], 0
      %s812 = sshll.u32 [#allocation3], 4
      %s813 = int_to_ptr.vmem [resolvable:$true] %s812
      %s814 = sshll.u32 %s8, 4
      %s815 = int_to_ptr.hbm [resolvable:$true] %s814
      %817 = dma.vmem_to_hbm [thread:$0]  %s813, 16, %s815, [#allocation4]
    $region37: #{utility_function_forward.3} parent=1 // pred_fallthru
      _
    // Predicated region
    $region38: #{utility_function_forward.3} parent=1 // pred_check
      _
    $region39: #{utility_function_forward.3} parent=1 // pred_check_branch
      %819 = sbr.rel (0) target = $region41
    $region40: #{utility_function_forward.3} parent=1 // pred_region
      %821 = dma.done [#allocation4], 16
    $region41: #{utility_function_forward.3} parent=1 // pred_fallthru
      _
    %822 = vsyncpa [#allocation4], 1

</llo_original>
